<compile_context>
chip_gen: v5e
topology: v5e:2x2
jax: 0.10.0
libtpu: 0.0.40
codegen_flags: <defaults>
</compile_context>

<pallas_src>
import functools

import jax
import jax.numpy as jnp
from jax.experimental import pallas as pl
from jax.experimental.pallas import tpu as pltpu


_LANE = 128          # lane alignment for the hidden axis
_VOCAB_ALIGN = 256   # MXU N alignment (2x256 MXU on v6e/v7x; also fine on v5e)
_TB = 8              # LSTM time-steps processed per serial grid iteration


def _round_up(x, m):
    return ((x + m - 1) // m) * m


def _pick_time_tile(tp, candidates=(128, 64, 32, 16, 8)):
    for c in candidates:
        if tp % c == 0:
            return c
    return tp


def _const_block(shape, single_buffer=True):
    """BlockSpec whose block never changes across the grid (resident)."""
    nd = len(shape)
    if single_buffer:
        return pl.BlockSpec(shape, lambda *_: (0,) * nd,
                            pipeline_mode=pl.Buffered(1))
    return pl.BlockSpec(shape, lambda *_: (0,) * nd)


# --------------------------------------------------------------------------- #
# Phase 1 kernel: serial LSTM recurrence (only the h/c-dependent work)
# --------------------------------------------------------------------------- #
def lstm_recurrence_kernel(
    xih_ref,                 # (TB, 4*Hp)  precomputed x_t @ W_ih^T + b (chunk)
    h0_ref, c0_ref,          # (1, Hp)     initial hidden / cell state
    whh_ref,                 # (Hp, 4*Hp)  W_hh^T, gate-blocked [i|f|g|o], f32
    hs_ref,                  # OUT (TB, Hp) per-step hidden states
    hT_ref, cT_ref,          # OUT (1, Hp)  final hidden / cell state
    h_scr, c_scr,            # VMEM scratch (1, Hp) — state across grid chunks
    *, t_valid, tb,
):
    Hp = h0_ref.shape[1]
    chunk = pl.program_id(0)

    @pl.when(chunk == 0)
    def _():
        h_scr[...] = h0_ref[...]
        c_scr[...] = c0_ref[...]

    h = h_scr[...]
    c = c_scr[...]
    # tb is small and static -> this Python loop fully unrolls at trace time
    # with static (lane-aligned) sublane offsets.
    for s in range(tb):
        gates = xih_ref[pl.ds(s, 1), :] + jnp.dot(
            h, whh_ref[...], preferred_element_type=jnp.float32)
        i_g = jax.nn.sigmoid(gates[:, 0 * Hp:1 * Hp])
        f_g = jax.nn.sigmoid(gates[:, 1 * Hp:2 * Hp])
        g_g = jnp.tanh(gates[:, 2 * Hp:3 * Hp])
        o_g = jax.nn.sigmoid(gates[:, 3 * Hp:4 * Hp])
        c_new = f_g * c + i_g * g_g
        h_new = o_g * jnp.tanh(c_new)
        hs_ref[pl.ds(s, 1), :] = h_new
        if t_valid % tb != 0:
            # Freeze the carried state on the statically-known padded tail
            # steps so the returned final hidden state is the one after step T.
            keep = (chunk * tb + s) < t_valid
            h_new = jnp.where(keep, h_new, h)
            c_new = jnp.where(keep, c_new, c)
        h, c = h_new, c_new

    h_scr[...] = h
    c_scr[...] = c
    # Constant output block index -> resident accumulator; last chunk's value
    # is what is written back to HBM.
    hT_ref[...] = h
    cT_ref[...] = c


# --------------------------------------------------------------------------- #
# Phase 2 kernel: batched output projection + log_softmax
# --------------------------------------------------------------------------- #
def output_projection_kernel(h_ref, wout_ref, bout_ref, logp_ref):
    # TODO(synk): nn.Dropout(0.3) on h would be applied here in training mode.
    logits = jnp.dot(h_ref[...].astype(wout_ref.dtype), wout_ref[...],
                     preferred_element_type=jnp.float32) + bout_ref[...]
    # log_softmax over the lane-padded vocab axis; padded lanes hold -1e30
    # (from the padded bias, f32) so they contribute nothing to max / sum-exp.
    m = jnp.max(logits, axis=-1, keepdims=True)
    shifted = logits - m
    lse = jnp.log(jnp.sum(jnp.exp(shifted), axis=-1, keepdims=True))
    logp_ref[...] = (shifted - lse).astype(logp_ref.dtype)


# --------------------------------------------------------------------------- #
# Parameter plumbing
# --------------------------------------------------------------------------- #
def prepare_params(raw, weight_dtype=jnp.float32):
    """Repack PyTorch-layout params into the padded kernel layout.

    raw = (emb (V,E), w_ih (4H,2E), w_hh (4H,H), b_ih (4H,), b_hh (4H,),
           w_out (V,H), b_out (V,))
    Gate order follows the PyTorch LSTM convention [i, f, g, o]; each gate
    block is padded from H to Hp lanes so every slice is 128-aligned.
    """
    emb, w_ih, w_hh, b_ih, b_hh, w_out, b_out = raw
    V, E = emb.shape
    H = w_hh.shape[1]
    Hp = _round_up(H, _LANE)
    Vp = _round_up(V, _VOCAB_ALIGN)

    # Recurrent weight (H,4H) -> gate-blocked, padded (Hp, 4Hp). Kept f32 even
    # when weight_dtype=bf16 (recurrence accumulates error over long T).
    whh_t = jnp.transpose(w_hh).astype(jnp.float32).reshape(H, 4, H)
    whh_p = (jnp.zeros((Hp, 4, Hp), jnp.float32)
             .at[:H, :, :H].set(whh_t).reshape(Hp, 4 * Hp))

    # Output projection, vocab lane-padded; pad bias = -1e30 (f32) so padded
    # lanes vanish in the softmax.
    wout_p = (jnp.zeros((Hp, Vp), jnp.float32)
              .at[:H, :V].set(jnp.transpose(w_out).astype(jnp.float32))
              .astype(weight_dtype))
    bout_p = jnp.full((1, Vp), -1e30, jnp.float32).at[0, :V].set(
        b_out.astype(jnp.float32))

    return dict(
        emb=emb.astype(jnp.float32),               # (V, E)  wrapper gather
        w_ih=w_ih.astype(jnp.float32),             # (4H, 2E) wrapper matmul
        bias=(b_ih + b_hh).astype(jnp.float32),    # (4H,)   fused bias
        whh=whh_p,                                 # (Hp, 4Hp) f32 resident
        wout=wout_p,                               # (Hp, Vp)
        bout=bout_p,                               # (1, Vp)
        E=E, H=H, Hp=Hp, V=V, Vp=Vp,
    )


# --------------------------------------------------------------------------- #
# Wrappers
# --------------------------------------------------------------------------- #
def decoder_rnn_decode(prep, encoder_outs, tokens, hidden):
    """Runs T teacher-forced DecoderRNN.forward steps.

    encoder_outs: (T, 1, E) float32, tokens: (T,) int, hidden: ((1,1,H),(1,1,H))
    returns: (log_probs (T, V), (h (1,1,H), c (1,1,H)))
    """
    E, H, Hp, V, Vp = prep["E"], prep["H"], prep["Hp"], prep["V"], prep["Vp"]
    T = int(tokens.shape[0])
    Tp = _round_up(T, _TB)

    # ---- Phase 0 (XLA): gather + non-recurrent gate half, batched over T ----
    tok = jnp.clip(jnp.asarray(tokens, jnp.int32).reshape(T), 0, V - 1)
    emb_rows = jnp.take(prep["emb"], tok, axis=0)                      # (T, E)
    x_in = jnp.concatenate(
        [encoder_outs.reshape(T, E).astype(jnp.float32), emb_rows], axis=1)
    x_ih = x_in @ prep["w_ih"].T + prep["bias"]                        # (T, 4H)
    x_ih_p = (jnp.zeros((Tp, 4, Hp), jnp.float32)
              .at[:T, :, :H].set(x_ih.reshape(T, 4, H)).reshape(Tp, 4 * Hp))

    h0 = jnp.zeros((1, Hp), jnp.float32).at[:, :H].set(
        hidden[0].reshape(1, H).astype(jnp.float32))
    c0 = jnp.zeros((1, Hp), jnp.float32).at[:, :H].set(
        hidden[1].reshape(1, H).astype(jnp.float32))

    # ---- Phase 1 (Pallas): serial recurrence over chunks of TB steps --------
    n_chunks = Tp // _TB
    rec_vmem = (2 * _TB * 4 * Hp * 4        # X_ih blocks (double-buffered)
                + Hp * 4 * Hp * 4           # W_hh^T (single-buffered)
                + 2 * _TB * Hp * 4          # hs output blocks
                + 8 * Hp * 4)               # h0/c0/hT/cT/scratch
    rec_params = pltpu.CompilerParams(
        dimension_semantics=("arbitrary",),          # time recurrence is serial
        vmem_limit_bytes=max(32 << 20, rec_vmem + (16 << 20)),
    )

    hs, h_fin, c_fin = pl.pallas_call(
        functools.partial(lstm_recurrence_kernel, t_valid=T, tb=_TB),
        grid_spec=pltpu.PrefetchScalarGridSpec(
            num_scalar_prefetch=0,
            grid=(n_chunks,),
            in_specs=[
                pl.BlockSpec((_TB, 4 * Hp), lambda c: (c, 0)),   # X_ih chunk
                _const_block((1, Hp)),                           # h0
                _const_block((1, Hp)),                           # c0
                _const_block((Hp, 4 * Hp)),                      # W_hh^T
            ],
            out_specs=(
                pl.BlockSpec((_TB, Hp), lambda c: (c, 0)),       # h_t chunk
                _const_block((1, Hp), single_buffer=False),      # final h
                _const_block((1, Hp), single_buffer=False),      # final c
            ),
            scratch_shapes=[pltpu.VMEM((1, Hp), jnp.float32),
                            pltpu.VMEM((1, Hp), jnp.float32)],
        ),
        out_shape=(
            jax.ShapeDtypeStruct((Tp, Hp), jnp.float32),
            jax.ShapeDtypeStruct((1, Hp), jnp.float32),
            jax.ShapeDtypeStruct((1, Hp), jnp.float32),
        ),
        compiler_params=rec_params,
    )(x_ih_p, h0, c0, prep["whh"])

    # ---- Phase 2 (Pallas): batched projection + log_softmax -----------------
    TM = _pick_time_tile(Tp)
    wout_bytes = Hp * Vp * jnp.dtype(prep["wout"].dtype).itemsize
    proj_vmem = (wout_bytes + Vp * 4          # resident W_out^T + bias
                 + 2 * TM * Hp * 4            # h tiles
                 + 2 * TM * Vp * 4)           # log-prob output tiles
    proj_params = pltpu.CompilerParams(
        dimension_semantics=("parallel",),    # T tiles independent -> multi-core
        vmem_limit_bytes=max(32 << 20, proj_vmem + (16 << 20)),
    )

    logp_p = pl.pallas_call(
        output_projection_kernel,
        grid_spec=pltpu.PrefetchScalarGridSpec(
            num_scalar_prefetch=0,
            grid=(Tp // TM,),
            in_specs=[
                pl.BlockSpec((TM, Hp), lambda i: (i, 0)),        # h tile
                _const_block((Hp, Vp)),                          # W_out^T
                _const_block((1, Vp)),                           # b_out (padded)
            ],
            out_specs=pl.BlockSpec((TM, Vp), lambda i: (i, 0)),
        ),
        out_shape=jax.ShapeDtypeStruct((Tp, Vp), jnp.float32),
        compiler_params=proj_params,
    )(hs, prep["wout"], prep["bout"])

    logp = logp_p[:T, :V]                      # strip time + vocab padding
    h_out = h_fin[:, :H].reshape(1, 1, H)
    c_out = c_fin[:, :H].reshape(1, 1, H)
    return logp, (h_out, c_out)


def decoder_rnn_forward(prep, encoder_out, word_input, hidden):
    """Mirrors DecoderRNN.forward(encoder_out, word_input, hidden) (one step)."""
    tok = jnp.asarray(word_input, jnp.int32).reshape(1)
    logp, hid = decoder_rnn_decode(
        prep, encoder_out.reshape(1, 1, prep["E"]), tok, hidden)
    return logp, hid                           # logp: (1, V)


# --------------------------------------------------------------------------- #
# Pure-JAX reference (matches PyTorch semantics, eval-mode dropout)
# --------------------------------------------------------------------------- #
def reference_step(raw, encoder_out, word_input, hidden):
    emb, w_ih, w_hh, b_ih, b_hh, w_out, b_out = raw
    E = emb.shape[1]
    H = w_hh.shape[1]
    embedded = emb[word_input].reshape(1, E)
    x = jnp.concatenate([encoder_out.reshape(1, E), embedded], axis=1)
    h = hidden[0].reshape(1, H)
    c = hidden[1].reshape(1, H)
    gates = x @ w_ih.T + b_ih + h @ w_hh.T + b_hh
    i = jax.nn.sigmoid(gates[:, 0:H])
    f = jax.nn.sigmoid(gates[:, H:2 * H])
    g = jnp.tanh(gates[:, 2 * H:3 * H])
    o = jax.nn.sigmoid(gates[:, 3 * H:4 * H])
    c_new = f * c + i * g
    h_new = o * jnp.tanh(c_new)
    logits = h_new @ w_out.T + b_out
    logp = jax.nn.log_softmax(logits, axis=1)
    return logp, (h_new.reshape(1, 1, H), c_new.reshape(1, 1, H))


def init_raw_params(key, vocab_size, embedding_dim, lstm_out_dim):
    ks = jax.random.split(key, 7)
    s = 0.1
    emb = s * jax.random.normal(ks[0], (vocab_size, embedding_dim), jnp.float32)
    w_ih = s * jax.random.normal(ks[1], (4 * lstm_out_dim, 2 * embedding_dim), jnp.float32)
    w_hh = s * jax.random.normal(ks[2], (4 * lstm_out_dim, lstm_out_dim), jnp.float32)
    b_ih = s * jax.random.normal(ks[3], (4 * lstm_out_dim,), jnp.float32)
    b_hh = s * jax.random.normal(ks[4], (4 * lstm_out_dim,), jnp.float32)
    w_out = s * jax.random.normal(ks[5], (vocab_size, lstm_out_dim), jnp.float32)
    b_out = s * jax.random.normal(ks[6], (vocab_size,), jnp.float32)
    return emb, w_ih, w_hh, b_ih, b_hh, w_out, b_out


# --------------------------------------------------------------------------- #
# Test
# --------------------------------------------------------------------------- #
if __name__ == "__main__":
    VOCAB, EMB, HID, T = 64, 16, 32, 11   # T=11 exercises the padded tail chunk

    key = jax.random.PRNGKey(0)
    k_params, k_enc, k_tok = jax.random.split(key, 3)

    raw = init_raw_params(k_params, VOCAB, EMB, HID)
    encoder_outs = 0.5 * jax.random.normal(k_enc, (T, 1, EMB), jnp.float32)
    tokens = jax.random.randint(k_tok, (T,), 0, VOCAB, dtype=jnp.int32)
    hidden0 = (jnp.zeros((1, 1, HID), jnp.float32),
               jnp.zeros((1, 1, HID), jnp.float32))  # init_hidden()

    prep_f32 = prepare_params(raw, weight_dtype=jnp.float32)

    # ---- single step (exactly the original DecoderRNN.forward) --------------
    logp1, hid1 = decoder_rnn_forward(prep_f32, encoder_outs[0:1], tokens[0], hidden0)
    jax.block_until_ready((logp1, hid1))
    ref_logp1, ref_hid1 = reference_step(raw, encoder_outs[0], tokens[0], hidden0)
    assert logp1.shape == (1, VOCAB)
    assert hid1[0].shape == (1, 1, HID) and hid1[1].shape == (1, 1, HID)
    assert jnp.allclose(logp1, ref_logp1, atol=1e-4)
    assert jnp.allclose(hid1[0], ref_hid1[0], atol=1e-4)
    assert jnp.allclose(hid1[1], ref_hid1[1], atol=1e-4)

    # ---- multi-step teacher-forced decode ------------------------------------
    logpT, hidT = decoder_rnn_decode(prep_f32, encoder_outs, tokens, hidden0)
    jax.block_until_ready((logpT, hidT))
    hid = hidden0
    ref_logps = []
    for t in range(T):
        lp, hid = reference_step(raw, encoder_outs[t], tokens[t], hid)
        ref_logps.append(lp)
    ref_logpT = jnp.concatenate(ref_logps, axis=0)
    assert logpT.shape == (T, VOCAB)
    assert jnp.allclose(logpT, ref_logpT, atol=1e-4)
    assert jnp.allclose(hidT[0], hid[0], atol=1e-4)
    assert jnp.allclose(hidT[1], hid[1], atol=1e-4)

    # ---- bf16 W_out storage (recurrence stays f32 -> hidden state exact) -----
    prep_bf16 = prepare_params(raw, weight_dtype=jnp.bfloat16)
    logpB, hidB = decoder_rnn_decode(prep_bf16, encoder_outs, tokens, hidden0)
    jax.block_until_ready((logpB, hidB))
    assert jnp.allclose(logpB, ref_logpT, atol=5e-2)
    assert jnp.allclose(hidB[0], hid[0], atol=1e-4)
    assert jnp.allclose(hidB[1], hid[1], atol=1e-4)

    print("KERNEL_OK")
</pallas_src>

<mosaic_0001>
module attributes {stable_mosaic.version = 11 : i64} {
  func.func @lstm_recurrence_kernel(%arg0: i32, %arg1: memref<8x512xf32, #tpu.memory_space<vmem>>, %arg2: memref<1x128xf32, #tpu.memory_space<vmem>>, %arg3: memref<1x128xf32, #tpu.memory_space<vmem>>, %arg4: memref<128x512xf32, #tpu.memory_space<vmem>>, %arg5: memref<8x128xf32, #tpu.memory_space<vmem>>, %arg6: memref<1x128xf32, #tpu.memory_space<vmem>>, %arg7: memref<1x128xf32, #tpu.memory_space<vmem>>, %arg8: memref<1x128xf32, #tpu.memory_space<vmem>>, %arg9: memref<1x128xf32, #tpu.memory_space<vmem>>) attributes {dimension_semantics = [#tpu.dimension_semantics<arbitrary>], iteration_bounds = array<i64: 1>, scalar_prefetch = 0 : i64, scratch_operands = 2 : i64, tpu.core_type = #tpu.core_type<tc>, window_params = [{transform_indices = @transform_0, window_bounds = array<i64: 8, 512>}, {pipeline_mode = #tpu.pipeline_mode<synchronous>, transform_indices = @transform_1, window_bounds = array<i64: 1, 128>}, {pipeline_mode = #tpu.pipeline_mode<synchronous>, transform_indices = @transform_2, window_bounds = array<i64: 1, 128>}, {pipeline_mode = #tpu.pipeline_mode<synchronous>, transform_indices = @transform_3, window_bounds = array<i64: 128, 512>}, {transform_indices = @transform_4, window_bounds = array<i64: 8, 128>}, {pipeline_mode = #tpu.pipeline_mode<synchronous>, transform_indices = @transform_5, window_bounds = array<i64: 1, 128>}, {pipeline_mode = #tpu.pipeline_mode<synchronous>, transform_indices = @transform_6, window_bounds = array<i64: 1, 128>}]} {
    %c0_i32 = arith.constant 0 : i32
    %0 = arith.cmpi eq, %arg0, %c0_i32 : i32
    %1 = arith.extui %0 : i1 to i32
    %c0_i32_0 = arith.constant 0 : i32
    %2 = arith.cmpi ne, %1, %c0_i32_0 : i32
    scf.if %2 {
      %c0_100 = arith.constant 0 : index
      %c0_101 = arith.constant 0 : index
      %289 = vector.load %arg2[%c0_100, %c0_101] : memref<1x128xf32, #tpu.memory_space<vmem>>, vector<1x128xf32>
      %c0_102 = arith.constant 0 : index
      %c0_103 = arith.constant 0 : index
      %290 = vector.load %arg8[%c0_102, %c0_103] : memref<1x128xf32, #tpu.memory_space<vmem>>, vector<1x128xf32>
      tpu.vector_store %arg8[%c0_102, %c0_103], %289 {strides = array<i32>} : memref<1x128xf32, #tpu.memory_space<vmem>>, vector<1x128xf32>,
      %c0_104 = arith.constant 0 : index
      %c0_105 = arith.constant 0 : index
      %291 = vector.load %arg3[%c0_104, %c0_105] : memref<1x128xf32, #tpu.memory_space<vmem>>, vector<1x128xf32>
      %c0_106 = arith.constant 0 : index
      %c0_107 = arith.constant 0 : index
      %292 = vector.load %arg9[%c0_106, %c0_107] : memref<1x128xf32, #tpu.memory_space<vmem>>, vector<1x128xf32>
      tpu.vector_store %arg9[%c0_106, %c0_107], %291 {strides = array<i32>} : memref<1x128xf32, #tpu.memory_space<vmem>>, vector<1x128xf32>,
    } else {
    }
    %c0 = arith.constant 0 : index
    %c0_1 = arith.constant 0 : index
    %3 = vector.load %arg8[%c0, %c0_1] : memref<1x128xf32, #tpu.memory_space<vmem>>, vector<1x128xf32>
    %c0_2 = arith.constant 0 : index
    %c0_3 = arith.constant 0 : index
    %4 = vector.load %arg9[%c0_2, %c0_3] : memref<1x128xf32, #tpu.memory_space<vmem>>, vector<1x128xf32>
    %c0_4 = arith.constant 0 : index
    %c0_5 = arith.constant 0 : index
    %5 = vector.load %arg1[%c0_4, %c0_5] : memref<8x512xf32, #tpu.memory_space<vmem>>, vector<1x512xf32>
    %c0_6 = arith.constant 0 : index
    %c0_7 = arith.constant 0 : index
    %6 = vector.load %arg4[%c0_6, %c0_7] : memref<128x512xf32, #tpu.memory_space<vmem>>, vector<128x512xf32>
    %cst = arith.constant dense<0.000000e+00> : vector<1x512xf32>
    %7 = tpu.matmul %3, %6, %cst {dimension_numbers = #tpu.dot_dimension_numbers<[1], [0], [0], [1], [0, 0, 1, 1], [], []>} : vector<1x128xf32>, vector<128x512xf32>, vector<1x512xf32> -> vector<1x512xf32>
    %8 = arith.addf %5, %7 : vector<1x512xf32>
    %9 = vector.extract_strided_slice %8 {offsets = [0, 0], sizes = [1, 128], strides = [1, 1]} : vector<1x512xf32> to vector<1x128xf32>
    %10 = arith.negf %9 : vector<1x128xf32>
    %11 = math.exp %10 : vector<1x128xf32>
    %cst_8 = arith.constant 1.000000e+00 : f32
    %12 = vector.broadcast %cst_8 : f32 to vector<1x128xf32>
    %13 = arith.addf %12, %11 : vector<1x128xf32>
    %14 = arith.divf %12, %13 : vector<1x128xf32>
    %15 = vector.extract_strided_slice %8 {offsets = [0, 128], sizes = [1, 128], strides = [1, 1]} : vector<1x512xf32> to vector<1x128xf32>
    %16 = arith.negf %15 : vector<1x128xf32>
    %17 = math.exp %16 : vector<1x128xf32>
    %cst_9 = arith.constant 1.000000e+00 : f32
    %18 = vector.broadcast %cst_9 : f32 to vector<1x128xf32>
    %19 = arith.addf %18, %17 : vector<1x128xf32>
    %20 = arith.divf %18, %19 : vector<1x128xf32>
    %21 = vector.extract_strided_slice %8 {offsets = [0, 256], sizes = [1, 128], strides = [1, 1]} : vector<1x512xf32> to vector<1x128xf32>
    %22 = math.tanh %21 : vector<1x128xf32>
    %23 = vector.extract_strided_slice %8 {offsets = [0, 384], sizes = [1, 128], strides = [1, 1]} : vector<1x512xf32> to vector<1x128xf32>
    %24 = arith.negf %23 : vector<1x128xf32>
    %25 = math.exp %24 : vector<1x128xf32>
    %cst_10 = arith.constant 1.000000e+00 : f32
    %26 = vector.broadcast %cst_10 : f32 to vector<1x128xf32>
    %27 = arith.addf %26, %25 : vector<1x128xf32>
    %28 = arith.divf %26, %27 : vector<1x128xf32>
    %29 = arith.mulf %20, %4 : vector<1x128xf32>
    %30 = arith.mulf %14, %22 : vector<1x128xf32>
    %31 = arith.addf %29, %30 : vector<1x128xf32>
    %32 = math.tanh %31 : vector<1x128xf32>
    %33 = arith.mulf %28, %32 : vector<1x128xf32>
    %c0_11 = arith.constant 0 : index
    %c0_12 = arith.constant 0 : index
    %34 = vector.load %arg5[%c0_11, %c0_12] : memref<8x128xf32, #tpu.memory_space<vmem>>, vector<1x128xf32>
    tpu.vector_store %arg5[%c0_11, %c0_12], %33 {strides = array<i32>} : memref<8x128xf32, #tpu.memory_space<vmem>>, vector<1x128xf32>,
    %c8_i32 = arith.constant 8 : i32
    %35 = arith.muli %arg0, %c8_i32 : i32
    %c0_i32_13 = arith.constant 0 : i32
    %36 = arith.addi %35, %c0_i32_13 : i32
    %c1_i32 = arith.constant 1 : i32
    %37 = arith.cmpi slt, %36, %c1_i32 : i32
    %38 = arith.select %37, %33, %3 : vector<1x128xf32>
    %39 = arith.select %37, %31, %4 : vector<1x128xf32>
    %c1 = arith.constant 1 : index
    %c0_14 = arith.constant 0 : index
    %40 = vector.load %arg1[%c1, %c0_14] : memref<8x512xf32, #tpu.memory_space<vmem>>, vector<1x512xf32>
    %c0_15 = arith.constant 0 : index
    %c0_16 = arith.constant 0 : index
    %41 = vector.load %arg4[%c0_15, %c0_16] : memref<128x512xf32, #tpu.memory_space<vmem>>, vector<128x512xf32>
    %cst_17 = arith.constant dense<0.000000e+00> : vector<1x512xf32>
    %42 = tpu.matmul %38, %41, %cst_17 {dimension_numbers = #tpu.dot_dimension_numbers<[1], [0], [0], [1], [0, 0, 1, 1], [], []>} : vector<1x128xf32>, vector<128x512xf32>, vector<1x512xf32> -> vector<1x512xf32>
    %43 = arith.addf %40, %42 : vector<1x512xf32>
    %44 = vector.extract_strided_slice %43 {offsets = [0, 0], sizes = [1, 128], strides = [1, 1]} : vector<1x512xf32> to vector<1x128xf32>
    %45 = arith.negf %44 : vector<1x128xf32>
    %46 = math.exp %45 : vector<1x128xf32>
    %cst_18 = arith.constant 1.000000e+00 : f32
    %47 = vector.broadcast %cst_18 : f32 to vector<1x128xf32>
    %48 = arith.addf %47, %46 : vector<1x128xf32>
    %49 = arith.divf %47, %48 : vector<1x128xf32>
    %50 = vector.extract_strided_slice %43 {offsets = [0, 128], sizes = [1, 128], strides = [1, 1]} : vector<1x512xf32> to vector<1x128xf32>
    %51 = arith.negf %50 : vector<1x128xf32>
    %52 = math.exp %51 : vector<1x128xf32>
    %cst_19 = arith.constant 1.000000e+00 : f32
    %53 = vector.broadcast %cst_19 : f32 to vector<1x128xf32>
    %54 = arith.addf %53, %52 : vector<1x128xf32>
    %55 = arith.divf %53, %54 : vector<1x128xf32>
    %56 = vector.extract_strided_slice %43 {offsets = [0, 256], sizes = [1, 128], strides = [1, 1]} : vector<1x512xf32> to vector<1x128xf32>
    %57 = math.tanh %56 : vector<1x128xf32>
    %58 = vector.extract_strided_slice %43 {offsets = [0, 384], sizes = [1, 128], strides = [1, 1]} : vector<1x512xf32> to vector<1x128xf32>
    %59 = arith.negf %58 : vector<1x128xf32>
    %60 = math.exp %59 : vector<1x128xf32>
    %cst_20 = arith.constant 1.000000e+00 : f32
    %61 = vector.broadcast %cst_20 : f32 to vector<1x128xf32>
    %62 = arith.addf %61, %60 : vector<1x128xf32>
    %63 = arith.divf %61, %62 : vector<1x128xf32>
    %64 = arith.mulf %55, %39 : vector<1x128xf32>
    %65 = arith.mulf %49, %57 : vector<1x128xf32>
    %66 = arith.addf %64, %65 : vector<1x128xf32>
    %67 = math.tanh %66 : vector<1x128xf32>
    %68 = arith.mulf %63, %67 : vector<1x128xf32>
    %c1_21 = arith.constant 1 : index
    %c0_22 = arith.constant 0 : index
    %69 = vector.load %arg5[%c1_21, %c0_22] : memref<8x128xf32, #tpu.memory_space<vmem>>, vector<1x128xf32>
    tpu.vector_store %arg5[%c1_21, %c0_22], %68 {strides = array<i32>} : memref<8x128xf32, #tpu.memory_space<vmem>>, vector<1x128xf32>,
    %c8_i32_23 = arith.constant 8 : i32
    %70 = arith.muli %arg0, %c8_i32_23 : i32
    %c1_i32_24 = arith.constant 1 : i32
    %71 = arith.addi %70, %c1_i32_24 : i32
    %c1_i32_25 = arith.constant 1 : i32
    %72 = arith.cmpi slt, %71, %c1_i32_25 : i32
    %73 = arith.select %72, %68, %38 : vector<1x128xf32>
    %74 = arith.select %72, %66, %39 : vector<1x128xf32>
    %c2 = arith.constant 2 : index
    %c0_26 = arith.constant 0 : index
    %75 = vector.load %arg1[%c2, %c0_26] : memref<8x512xf32, #tpu.memory_space<vmem>>, vector<1x512xf32>
    %c0_27 = arith.constant 0 : index
    %c0_28 = arith.constant 0 : index
    %76 = vector.load %arg4[%c0_27, %c0_28] : memref<128x512xf32, #tpu.memory_space<vmem>>, vector<128x512xf32>
    %cst_29 = arith.constant dense<0.000000e+00> : vector<1x512xf32>
    %77 = tpu.matmul %73, %76, %cst_29 {dimension_numbers = #tpu.dot_dimension_numbers<[1], [0], [0], [1], [0, 0, 1, 1], [], []>} : vector<1x128xf32>, vector<128x512xf32>, vector<1x512xf32> -> vector<1x512xf32>
    %78 = arith.addf %75, %77 : vector<1x512xf32>
    %79 = vector.extract_strided_slice %78 {offsets = [0, 0], sizes = [1, 128], strides = [1, 1]} : vector<1x512xf32> to vector<1x128xf32>
    %80 = arith.negf %79 : vector<1x128xf32>
    %81 = math.exp %80 : vector<1x128xf32>
    %cst_30 = arith.constant 1.000000e+00 : f32
    %82 = vector.broadcast %cst_30 : f32 to vector<1x128xf32>
    %83 = arith.addf %82, %81 : vector<1x128xf32>
    %84 = arith.divf %82, %83 : vector<1x128xf32>
    %85 = vector.extract_strided_slice %78 {offsets = [0, 128], sizes = [1, 128], strides = [1, 1]} : vector<1x512xf32> to vector<1x128xf32>
    %86 = arith.negf %85 : vector<1x128xf32>
    %87 = math.exp %86 : vector<1x128xf32>
    %cst_31 = arith.constant 1.000000e+00 : f32
    %88 = vector.broadcast %cst_31 : f32 to vector<1x128xf32>
    %89 = arith.addf %88, %87 : vector<1x128xf32>
    %90 = arith.divf %88, %89 : vector<1x128xf32>
    %91 = vector.extract_strided_slice %78 {offsets = [0, 256], sizes = [1, 128], strides = [1, 1]} : vector<1x512xf32> to vector<1x128xf32>
    %92 = math.tanh %91 : vector<1x128xf32>
    %93 = vector.extract_strided_slice %78 {offsets = [0, 384], sizes = [1, 128], strides = [1, 1]} : vector<1x512xf32> to vector<1x128xf32>
    %94 = arith.negf %93 : vector<1x128xf32>
    %95 = math.exp %94 : vector<1x128xf32>
    %cst_32 = arith.constant 1.000000e+00 : f32
    %96 = vector.broadcast %cst_32 : f32 to vector<1x128xf32>
    %97 = arith.addf %96, %95 : vector<1x128xf32>
    %98 = arith.divf %96, %97 : vector<1x128xf32>
    %99 = arith.mulf %90, %74 : vector<1x128xf32>
    %100 = arith.mulf %84, %92 : vector<1x128xf32>
    %101 = arith.addf %99, %100 : vector<1x128xf32>
    %102 = math.tanh %101 : vector<1x128xf32>
    %103 = arith.mulf %98, %102 : vector<1x128xf32>
    %c2_33 = arith.constant 2 : index
    %c0_34 = arith.constant 0 : index
    %104 = vector.load %arg5[%c2_33, %c0_34] : memref<8x128xf32, #tpu.memory_space<vmem>>, vector<1x128xf32>
    tpu.vector_store %arg5[%c2_33, %c0_34], %103 {strides = array<i32>} : memref<8x128xf32, #tpu.memory_space<vmem>>, vector<1x128xf32>,
    %c8_i32_35 = arith.constant 8 : i32
    %105 = arith.muli %arg0, %c8_i32_35 : i32
    %c2_i32 = arith.constant 2 : i32
    %106 = arith.addi %105, %c2_i32 : i32
    %c1_i32_36 = arith.constant 1 : i32
    %107 = arith.cmpi slt, %106, %c1_i32_36 : i32
    %108 = arith.select %107, %103, %73 : vector<1x128xf32>
    %109 = arith.select %107, %101, %74 : vector<1x128xf32>
    %c3 = arith.constant 3 : index
    %c0_37 = arith.constant 0 : index
    %110 = vector.load %arg1[%c3, %c0_37] : memref<8x512xf32, #tpu.memory_space<vmem>>, vector<1x512xf32>
    %c0_38 = arith.constant 0 : index
    %c0_39 = arith.constant 0 : index
    %111 = vector.load %arg4[%c0_38, %c0_39] : memref<128x512xf32, #tpu.memory_space<vmem>>, vector<128x512xf32>
    %cst_40 = arith.constant dense<0.000000e+00> : vector<1x512xf32>
    %112 = tpu.matmul %108, %111, %cst_40 {dimension_numbers = #tpu.dot_dimension_numbers<[1], [0], [0], [1], [0, 0, 1, 1], [], []>} : vector<1x128xf32>, vector<128x512xf32>, vector<1x512xf32> -> vector<1x512xf32>
    %113 = arith.addf %110, %112 : vector<1x512xf32>
    %114 = vector.extract_strided_slice %113 {offsets = [0, 0], sizes = [1, 128], strides = [1, 1]} : vector<1x512xf32> to vector<1x128xf32>
    %115 = arith.negf %114 : vector<1x128xf32>
    %116 = math.exp %115 : vector<1x128xf32>
    %cst_41 = arith.constant 1.000000e+00 : f32
    %117 = vector.broadcast %cst_41 : f32 to vector<1x128xf32>
    %118 = arith.addf %117, %116 : vector<1x128xf32>
    %119 = arith.divf %117, %118 : vector<1x128xf32>
    %120 = vector.extract_strided_slice %113 {offsets = [0, 128], sizes = [1, 128], strides = [1, 1]} : vector<1x512xf32> to vector<1x128xf32>
    %121 = arith.negf %120 : vector<1x128xf32>
    %122 = math.exp %121 : vector<1x128xf32>
    %cst_42 = arith.constant 1.000000e+00 : f32
    %123 = vector.broadcast %cst_42 : f32 to vector<1x128xf32>
    %124 = arith.addf %123, %122 : vector<1x128xf32>
    %125 = arith.divf %123, %124 : vector<1x128xf32>
    %126 = vector.extract_strided_slice %113 {offsets = [0, 256], sizes = [1, 128], strides = [1, 1]} : vector<1x512xf32> to vector<1x128xf32>
    %127 = math.tanh %126 : vector<1x128xf32>
    %128 = vector.extract_strided_slice %113 {offsets = [0, 384], sizes = [1, 128], strides = [1, 1]} : vector<1x512xf32> to vector<1x128xf32>
    %129 = arith.negf %128 : vector<1x128xf32>
    %130 = math.exp %129 : vector<1x128xf32>
    %cst_43 = arith.constant 1.000000e+00 : f32
    %131 = vector.broadcast %cst_43 : f32 to vector<1x128xf32>
    %132 = arith.addf %131, %130 : vector<1x128xf32>
    %133 = arith.divf %131, %132 : vector<1x128xf32>
    %134 = arith.mulf %125, %109 : vector<1x128xf32>
    %135 = arith.mulf %119, %127 : vector<1x128xf32>
    %136 = arith.addf %134, %135 : vector<1x128xf32>
    %137 = math.tanh %136 : vector<1x128xf32>
    %138 = arith.mulf %133, %137 : vector<1x128xf32>
    %c3_44 = arith.constant 3 : index
    %c0_45 = arith.constant 0 : index
    %139 = vector.load %arg5[%c3_44, %c0_45] : memref<8x128xf32, #tpu.memory_space<vmem>>, vector<1x128xf32>
    tpu.vector_store %arg5[%c3_44, %c0_45], %138 {strides = array<i32>} : memref<8x128xf32, #tpu.memory_space<vmem>>, vector<1x128xf32>,
    %c8_i32_46 = arith.constant 8 : i32
    %140 = arith.muli %arg0, %c8_i32_46 : i32
    %c3_i32 = arith.constant 3 : i32
    %141 = arith.addi %140, %c3_i32 : i32
    %c1_i32_47 = arith.constant 1 : i32
    %142 = arith.cmpi slt, %141, %c1_i32_47 : i32
    %143 = arith.select %142, %138, %108 : vector<1x128xf32>
    %144 = arith.select %142, %136, %109 : vector<1x128xf32>
    %c4 = arith.constant 4 : index
    %c0_48 = arith.constant 0 : index
    %145 = vector.load %arg1[%c4, %c0_48] : memref<8x512xf32, #tpu.memory_space<vmem>>, vector<1x512xf32>
    %c0_49 = arith.constant 0 : index
    %c0_50 = arith.constant 0 : index
    %146 = vector.load %arg4[%c0_49, %c0_50] : memref<128x512xf32, #tpu.memory_space<vmem>>, vector<128x512xf32>
    %cst_51 = arith.constant dense<0.000000e+00> : vector<1x512xf32>
    %147 = tpu.matmul %143, %146, %cst_51 {dimension_numbers = #tpu.dot_dimension_numbers<[1], [0], [0], [1], [0, 0, 1, 1], [], []>} : vector<1x128xf32>, vector<128x512xf32>, vector<1x512xf32> -> vector<1x512xf32>
    %148 = arith.addf %145, %147 : vector<1x512xf32>
    %149 = vector.extract_strided_slice %148 {offsets = [0, 0], sizes = [1, 128], strides = [1, 1]} : vector<1x512xf32> to vector<1x128xf32>
    %150 = arith.negf %149 : vector<1x128xf32>
    %151 = math.exp %150 : vector<1x128xf32>
    %cst_52 = arith.constant 1.000000e+00 : f32
    %152 = vector.broadcast %cst_52 : f32 to vector<1x128xf32>
    %153 = arith.addf %152, %151 : vector<1x128xf32>
    %154 = arith.divf %152, %153 : vector<1x128xf32>
    %155 = vector.extract_strided_slice %148 {offsets = [0, 128], sizes = [1, 128], strides = [1, 1]} : vector<1x512xf32> to vector<1x128xf32>
    %156 = arith.negf %155 : vector<1x128xf32>
    %157 = math.exp %156 : vector<1x128xf32>
    %cst_53 = arith.constant 1.000000e+00 : f32
    %158 = vector.broadcast %cst_53 : f32 to vector<1x128xf32>
    %159 = arith.addf %158, %157 : vector<1x128xf32>
    %160 = arith.divf %158, %159 : vector<1x128xf32>
    %161 = vector.extract_strided_slice %148 {offsets = [0, 256], sizes = [1, 128], strides = [1, 1]} : vector<1x512xf32> to vector<1x128xf32>
    %162 = math.tanh %161 : vector<1x128xf32>
    %163 = vector.extract_strided_slice %148 {offsets = [0, 384], sizes = [1, 128], strides = [1, 1]} : vector<1x512xf32> to vector<1x128xf32>
    %164 = arith.negf %163 : vector<1x128xf32>
    %165 = math.exp %164 : vector<1x128xf32>
    %cst_54 = arith.constant 1.000000e+00 : f32
    %166 = vector.broadcast %cst_54 : f32 to vector<1x128xf32>
    %167 = arith.addf %166, %165 : vector<1x128xf32>
    %168 = arith.divf %166, %167 : vector<1x128xf32>
    %169 = arith.mulf %160, %144 : vector<1x128xf32>
    %170 = arith.mulf %154, %162 : vector<1x128xf32>
    %171 = arith.addf %169, %170 : vector<1x128xf32>
    %172 = math.tanh %171 : vector<1x128xf32>
    %173 = arith.mulf %168, %172 : vector<1x128xf32>
    %c4_55 = arith.constant 4 : index
    %c0_56 = arith.constant 0 : index
    %174 = vector.load %arg5[%c4_55, %c0_56] : memref<8x128xf32, #tpu.memory_space<vmem>>, vector<1x128xf32>
    tpu.vector_store %arg5[%c4_55, %c0_56], %173 {strides = array<i32>} : memref<8x128xf32, #tpu.memory_space<vmem>>, vector<1x128xf32>,
    %c8_i32_57 = arith.constant 8 : i32
    %175 = arith.muli %arg0, %c8_i32_57 : i32
    %c4_i32 = arith.constant 4 : i32
    %176 = arith.addi %175, %c4_i32 : i32
    %c1_i32_58 = arith.constant 1 : i32
    %177 = arith.cmpi slt, %176, %c1_i32_58 : i32
    %178 = arith.select %177, %173, %143 : vector<1x128xf32>
    %179 = arith.select %177, %171, %144 : vector<1x128xf32>
    %c5 = arith.constant 5 : index
    %c0_59 = arith.constant 0 : index
    %180 = vector.load %arg1[%c5, %c0_59] : memref<8x512xf32, #tpu.memory_space<vmem>>, vector<1x512xf32>
    %c0_60 = arith.constant 0 : index
    %c0_61 = arith.constant 0 : index
    %181 = vector.load %arg4[%c0_60, %c0_61] : memref<128x512xf32, #tpu.memory_space<vmem>>, vector<128x512xf32>
    %cst_62 = arith.constant dense<0.000000e+00> : vector<1x512xf32>
    %182 = tpu.matmul %178, %181, %cst_62 {dimension_numbers = #tpu.dot_dimension_numbers<[1], [0], [0], [1], [0, 0, 1, 1], [], []>} : vector<1x128xf32>, vector<128x512xf32>, vector<1x512xf32> -> vector<1x512xf32>
    %183 = arith.addf %180, %182 : vector<1x512xf32>
    %184 = vector.extract_strided_slice %183 {offsets = [0, 0], sizes = [1, 128], strides = [1, 1]} : vector<1x512xf32> to vector<1x128xf32>
    %185 = arith.negf %184 : vector<1x128xf32>
    %186 = math.exp %185 : vector<1x128xf32>
    %cst_63 = arith.constant 1.000000e+00 : f32
    %187 = vector.broadcast %cst_63 : f32 to vector<1x128xf32>
    %188 = arith.addf %187, %186 : vector<1x128xf32>
    %189 = arith.divf %187, %188 : vector<1x128xf32>
    %190 = vector.extract_strided_slice %183 {offsets = [0, 128], sizes = [1, 128], strides = [1, 1]} : vector<1x512xf32> to vector<1x128xf32>
    %191 = arith.negf %190 : vector<1x128xf32>
    %192 = math.exp %191 : vector<1x128xf32>
    %cst_64 = arith.constant 1.000000e+00 : f32
    %193 = vector.broadcast %cst_64 : f32 to vector<1x128xf32>
    %194 = arith.addf %193, %192 : vector<1x128xf32>
    %195 = arith.divf %193, %194 : vector<1x128xf32>
    %196 = vector.extract_strided_slice %183 {offsets = [0, 256], sizes = [1, 128], strides = [1, 1]} : vector<1x512xf32> to vector<1x128xf32>
    %197 = math.tanh %196 : vector<1x128xf32>
    %198 = vector.extract_strided_slice %183 {offsets = [0, 384], sizes = [1, 128], strides = [1, 1]} : vector<1x512xf32> to vector<1x128xf32>
    %199 = arith.negf %198 : vector<1x128xf32>
    %200 = math.exp %199 : vector<1x128xf32>
    %cst_65 = arith.constant 1.000000e+00 : f32
    %201 = vector.broadcast %cst_65 : f32 to vector<1x128xf32>
    %202 = arith.addf %201, %200 : vector<1x128xf32>
    %203 = arith.divf %201, %202 : vector<1x128xf32>
    %204 = arith.mulf %195, %179 : vector<1x128xf32>
    %205 = arith.mulf %189, %197 : vector<1x128xf32>
    %206 = arith.addf %204, %205 : vector<1x128xf32>
    %207 = math.tanh %206 : vector<1x128xf32>
    %208 = arith.mulf %203, %207 : vector<1x128xf32>
    %c5_66 = arith.constant 5 : index
    %c0_67 = arith.constant 0 : index
    %209 = vector.load %arg5[%c5_66, %c0_67] : memref<8x128xf32, #tpu.memory_space<vmem>>, vector<1x128xf32>
    tpu.vector_store %arg5[%c5_66, %c0_67], %208 {strides = array<i32>} : memref<8x128xf32, #tpu.memory_space<vmem>>, vector<1x128xf32>,
    %c8_i32_68 = arith.constant 8 : i32
    %210 = arith.muli %arg0, %c8_i32_68 : i32
    %c5_i32 = arith.constant 5 : i32
    %211 = arith.addi %210, %c5_i32 : i32
    %c1_i32_69 = arith.constant 1 : i32
    %212 = arith.cmpi slt, %211, %c1_i32_69 : i32
    %213 = arith.select %212, %208, %178 : vector<1x128xf32>
    %214 = arith.select %212, %206, %179 : vector<1x128xf32>
    %c6 = arith.constant 6 : index
    %c0_70 = arith.constant 0 : index
    %215 = vector.load %arg1[%c6, %c0_70] : memref<8x512xf32, #tpu.memory_space<vmem>>, vector<1x512xf32>
    %c0_71 = arith.constant 0 : index
    %c0_72 = arith.constant 0 : index
    %216 = vector.load %arg4[%c0_71, %c0_72] : memref<128x512xf32, #tpu.memory_space<vmem>>, vector<128x512xf32>
    %cst_73 = arith.constant dense<0.000000e+00> : vector<1x512xf32>
    %217 = tpu.matmul %213, %216, %cst_73 {dimension_numbers = #tpu.dot_dimension_numbers<[1], [0], [0], [1], [0, 0, 1, 1], [], []>} : vector<1x128xf32>, vector<128x512xf32>, vector<1x512xf32> -> vector<1x512xf32>
    %218 = arith.addf %215, %217 : vector<1x512xf32>
    %219 = vector.extract_strided_slice %218 {offsets = [0, 0], sizes = [1, 128], strides = [1, 1]} : vector<1x512xf32> to vector<1x128xf32>
    %220 = arith.negf %219 : vector<1x128xf32>
    %221 = math.exp %220 : vector<1x128xf32>
    %cst_74 = arith.constant 1.000000e+00 : f32
    %222 = vector.broadcast %cst_74 : f32 to vector<1x128xf32>
    %223 = arith.addf %222, %221 : vector<1x128xf32>
    %224 = arith.divf %222, %223 : vector<1x128xf32>
    %225 = vector.extract_strided_slice %218 {offsets = [0, 128], sizes = [1, 128], strides = [1, 1]} : vector<1x512xf32> to vector<1x128xf32>
    %226 = arith.negf %225 : vector<1x128xf32>
    %227 = math.exp %226 : vector<1x128xf32>
    %cst_75 = arith.constant 1.000000e+00 : f32
    %228 = vector.broadcast %cst_75 : f32 to vector<1x128xf32>
    %229 = arith.addf %228, %227 : vector<1x128xf32>
    %230 = arith.divf %228, %229 : vector<1x128xf32>
    %231 = vector.extract_strided_slice %218 {offsets = [0, 256], sizes = [1, 128], strides = [1, 1]} : vector<1x512xf32> to vector<1x128xf32>
    %232 = math.tanh %231 : vector<1x128xf32>
    %233 = vector.extract_strided_slice %218 {offsets = [0, 384], sizes = [1, 128], strides = [1, 1]} : vector<1x512xf32> to vector<1x128xf32>
    %234 = arith.negf %233 : vector<1x128xf32>
    %235 = math.exp %234 : vector<1x128xf32>
    %cst_76 = arith.constant 1.000000e+00 : f32
    %236 = vector.broadcast %cst_76 : f32 to vector<1x128xf32>
    %237 = arith.addf %236, %235 : vector<1x128xf32>
    %238 = arith.divf %236, %237 : vector<1x128xf32>
    %239 = arith.mulf %230, %214 : vector<1x128xf32>
    %240 = arith.mulf %224, %232 : vector<1x128xf32>
    %241 = arith.addf %239, %240 : vector<1x128xf32>
    %242 = math.tanh %241 : vector<1x128xf32>
    %243 = arith.mulf %238, %242 : vector<1x128xf32>
    %c6_77 = arith.constant 6 : index
    %c0_78 = arith.constant 0 : index
    %244 = vector.load %arg5[%c6_77, %c0_78] : memref<8x128xf32, #tpu.memory_space<vmem>>, vector<1x128xf32>
    tpu.vector_store %arg5[%c6_77, %c0_78], %243 {strides = array<i32>} : memref<8x128xf32, #tpu.memory_space<vmem>>, vector<1x128xf32>,
    %c8_i32_79 = arith.constant 8 : i32
    %245 = arith.muli %arg0, %c8_i32_79 : i32
    %c6_i32 = arith.constant 6 : i32
    %246 = arith.addi %245, %c6_i32 : i32
    %c1_i32_80 = arith.constant 1 : i32
    %247 = arith.cmpi slt, %246, %c1_i32_80 : i32
    %248 = arith.select %247, %243, %213 : vector<1x128xf32>
    %249 = arith.select %247, %241, %214 : vector<1x128xf32>
    %c7 = arith.constant 7 : index
    %c0_81 = arith.constant 0 : index
    %250 = vector.load %arg1[%c7, %c0_81] : memref<8x512xf32, #tpu.memory_space<vmem>>, vector<1x512xf32>
    %c0_82 = arith.constant 0 : index
    %c0_83 = arith.constant 0 : index
    %251 = vector.load %arg4[%c0_82, %c0_83] : memref<128x512xf32, #tpu.memory_space<vmem>>, vector<128x512xf32>
    %cst_84 = arith.constant dense<0.000000e+00> : vector<1x512xf32>
    %252 = tpu.matmul %248, %251, %cst_84 {dimension_numbers = #tpu.dot_dimension_numbers<[1], [0], [0], [1], [0, 0, 1, 1], [], []>} : vector<1x128xf32>, vector<128x512xf32>, vector<1x512xf32> -> vector<1x512xf32>
    %253 = arith.addf %250, %252 : vector<1x512xf32>
    %254 = vector.extract_strided_slice %253 {offsets = [0, 0], sizes = [1, 128], strides = [1, 1]} : vector<1x512xf32> to vector<1x128xf32>
    %255 = arith.negf %254 : vector<1x128xf32>
    %256 = math.exp %255 : vector<1x128xf32>
    %cst_85 = arith.constant 1.000000e+00 : f32
    %257 = vector.broadcast %cst_85 : f32 to vector<1x128xf32>
    %258 = arith.addf %257, %256 : vector<1x128xf32>
    %259 = arith.divf %257, %258 : vector<1x128xf32>
    %260 = vector.extract_strided_slice %253 {offsets = [0, 128], sizes = [1, 128], strides = [1, 1]} : vector<1x512xf32> to vector<1x128xf32>
    %261 = arith.negf %260 : vector<1x128xf32>
    %262 = math.exp %261 : vector<1x128xf32>
    %cst_86 = arith.constant 1.000000e+00 : f32
    %263 = vector.broadcast %cst_86 : f32 to vector<1x128xf32>
    %264 = arith.addf %263, %262 : vector<1x128xf32>
    %265 = arith.divf %263, %264 : vector<1x128xf32>
    %266 = vector.extract_strided_slice %253 {offsets = [0, 256], sizes = [1, 128], strides = [1, 1]} : vector<1x512xf32> to vector<1x128xf32>
    %267 = math.tanh %266 : vector<1x128xf32>
    %268 = vector.extract_strided_slice %253 {offsets = [0, 384], sizes = [1, 128], strides = [1, 1]} : vector<1x512xf32> to vector<1x128xf32>
    %269 = arith.negf %268 : vector<1x128xf32>
    %270 = math.exp %269 : vector<1x128xf32>
    %cst_87 = arith.constant 1.000000e+00 : f32
    %271 = vector.broadcast %cst_87 : f32 to vector<1x128xf32>
    %272 = arith.addf %271, %270 : vector<1x128xf32>
    %273 = arith.divf %271, %272 : vector<1x128xf32>
    %274 = arith.mulf %265, %249 : vector<1x128xf32>
    %275 = arith.mulf %259, %267 : vector<1x128xf32>
    %276 = arith.addf %274, %275 : vector<1x128xf32>
    %277 = math.tanh %276 : vector<1x128xf32>
    %278 = arith.mulf %273, %277 : vector<1x128xf32>
    %c7_88 = arith.constant 7 : index
    %c0_89 = arith.constant 0 : index
    %279 = vector.load %arg5[%c7_88, %c0_89] : memref<8x128xf32, #tpu.memory_space<vmem>>, vector<1x128xf32>
    tpu.vector_store %arg5[%c7_88, %c0_89], %278 {strides = array<i32>} : memref<8x128xf32, #tpu.memory_space<vmem>>, vector<1x128xf32>,
    %c8_i32_90 = arith.constant 8 : i32
    %280 = arith.muli %arg0, %c8_i32_90 : i32
    %c7_i32 = arith.constant 7 : i32
    %281 = arith.addi %280, %c7_i32 : i32
    %c1_i32_91 = arith.constant 1 : i32
    %282 = arith.cmpi slt, %281, %c1_i32_91 : i32
    %283 = arith.select %282, %278, %248 : vector<1x128xf32>
    %284 = arith.select %282, %276, %249 : vector<1x128xf32>
    %c0_92 = arith.constant 0 : index
    %c0_93 = arith.constant 0 : index
    %285 = vector.load %arg8[%c0_92, %c0_93] : memref<1x128xf32, #tpu.memory_space<vmem>>, vector<1x128xf32>
    tpu.vector_store %arg8[%c0_92, %c0_93], %283 {strides = array<i32>} : memref<1x128xf32, #tpu.memory_space<vmem>>, vector<1x128xf32>,
    %c0_94 = arith.constant 0 : index
    %c0_95 = arith.constant 0 : index
    %286 = vector.load %arg9[%c0_94, %c0_95] : memref<1x128xf32, #tpu.memory_space<vmem>>, vector<1x128xf32>
    tpu.vector_store %arg9[%c0_94, %c0_95], %284 {strides = array<i32>} : memref<1x128xf32, #tpu.memory_space<vmem>>, vector<1x128xf32>,
    %c0_96 = arith.constant 0 : index
    %c0_97 = arith.constant 0 : index
    %287 = vector.load %arg6[%c0_96, %c0_97] : memref<1x128xf32, #tpu.memory_space<vmem>>, vector<1x128xf32>
    tpu.vector_store %arg6[%c0_96, %c0_97], %283 {strides = array<i32>} : memref<1x128xf32, #tpu.memory_space<vmem>>, vector<1x128xf32>,
    %c0_98 = arith.constant 0 : index
    %c0_99 = arith.constant 0 : index
    %288 = vector.load %arg7[%c0_98, %c0_99] : memref<1x128xf32, #tpu.memory_space<vmem>>, vector<1x128xf32>
    tpu.vector_store %arg7[%c0_98, %c0_99], %284 {strides = array<i32>} : memref<1x128xf32, #tpu.memory_space<vmem>>, vector<1x128xf32>,
    return
  }
  func.func @transform_0(%arg0: i32) -> (i32, i32) {
    %c0_i32 = arith.constant 0 : i32
    %c0_i32_0 = arith.constant 0 : i32
    return %arg0, %c0_i32 : i32, i32
  }
  func.func @transform_1(%arg0: i32) -> (i32, i32) {
    %c0_i32 = arith.constant 0 : i32
    %c0_i32_0 = arith.constant 0 : i32
    %c0_i32_1 = arith.constant 0 : i32
    return %c0_i32, %c0_i32_0 : i32, i32
  }
  func.func @transform_2(%arg0: i32) -> (i32, i32) {
    %c0_i32 = arith.constant 0 : i32
    %c0_i32_0 = arith.constant 0 : i32
    %c0_i32_1 = arith.constant 0 : i32
    return %c0_i32, %c0_i32_0 : i32, i32
  }
  func.func @transform_3(%arg0: i32) -> (i32, i32) {
    %c0_i32 = arith.constant 0 : i32
    %c0_i32_0 = arith.constant 0 : i32
    %c0_i32_1 = arith.constant 0 : i32
    return %c0_i32, %c0_i32_0 : i32, i32
  }
  func.func @transform_4(%arg0: i32) -> (i32, i32) {
    %c0_i32 = arith.constant 0 : i32
    %c0_i32_0 = arith.constant 0 : i32
    return %arg0, %c0_i32 : i32, i32
  }
  func.func @transform_5(%arg0: i32) -> (i32, i32) {
    %c0_i32 = arith.constant 0 : i32
    %c0_i32_0 = arith.constant 0 : i32
    %c0_i32_1 = arith.constant 0 : i32
    return %c0_i32, %c0_i32_0 : i32, i32
  }
  func.func @transform_6(%arg0: i32) -> (i32, i32) {
    %c0_i32 = arith.constant 0 : i32
    %c0_i32_0 = arith.constant 0 : i32
    %c0_i32_1 = arith.constant 0 : i32
    return %c0_i32, %c0_i32_0 : i32, i32
  }
}

</mosaic_0001>

<llo_original>
// kernel: tpu_custom_call.1
$region0: #{tpu_custom_call.1}
  #allocation0 [shape = 'u32[]', space=smem, size = 0x4, offset = 0x4, fixed_abs, tag = 'smem constant byte address 0x4 - core index']
  #allocation1 [shape = 'u32[72,128]{1,0:T(1,128)}', space=vmem, size = 0x9000, scoped, tag = 'internal scratch']
  #allocation2 [shape = 'f32[1,128]{1,0:T(1,128)}', space=vmem, size = 0x200, scoped, tag = 'scratch operand']
  #allocation3 [shape = 'f32[1,128]{1,0:T(1,128)}', space=vmem, size = 0x200, scoped, tag = 'scratch operand']
  %s0 = inlined_call_operand.hbm [shape: f32[8,512], index: 0, kind: input, shape index: {}]
  %s1 = inlined_call_operand.hbm [shape: f32[1,128], index: 1, kind: input, shape index: {}]
  %s2 = inlined_call_operand.vmem [shape: f32[1,128], index: 2, kind: input, shape index: {}]
  %s3 = inlined_call_operand.hbm [shape: f32[128,512], index: 3, kind: input, shape index: {}]
  %s4 = inlined_call_operand.hbm [shape: f32[8,128], index: 4, kind: output, shape index: {0}]
  %s5 = inlined_call_operand.hbm [shape: f32[1,128], index: 5, kind: output, shape index: {1}]
  %s6 = inlined_call_operand.hbm [shape: f32[1,128], index: 6, kind: output, shape index: {2}]
  %7 = xla_tuple %s4, %s5, %s6
  %s8 = sld [smem:[#allocation0]]
  $region58: #{tpu_custom_call.1} parent=0
    _
  %s10 = ssub.s32 1, %s8
  %s11 = scalar_select 0, %s10, %s8
  $region1: #{tpu_custom_call.1} parent=0
    #allocation4 [shape = 'u8[16384]{0}', space=vmem, size = 0x4000, scoped, tag = 'input window, operand 0, single buffered']
    #allocation5 [shape = 's32[1]{0}', space=sflag, size = 0x4, scoped, tag = 'scoped memory for tpu_custom_call.1']
    #allocation6 [shape = 's32[1]{0}', space=sflag, size = 0x4, scoped, tag = 'scoped memory for tpu_custom_call.1']
    #allocation7 [shape = 'u8[512]{0}', space=vmem, size = 0x400, scoped, tag = 'input window, operand 1, single buffered']
    #allocation8 [shape = 's32[1]{0}', space=sflag, size = 0x4, scoped, tag = 'scoped memory for tpu_custom_call.1']
    #allocation9 [shape = 'u8[262144]{0}', space=vmem, size = 0x40000, scoped, tag = 'input window, operand 3, single buffered']
    #allocation10 [shape = 'u8[4096]{0}', space=vmem, size = 0x1000, scoped, tag = 'output window, operand 0, single buffered']
    #allocation11 [shape = 'u8[512]{0}', space=vmem, size = 0x400, scoped, tag = 'output window, operand 1, single buffered']
    #allocation12 [shape = 's32[1]{0}', space=sflag, size = 0x4, scoped, tag = 'scoped memory for tpu_custom_call.1']
    #allocation13 [shape = 'u8[512]{0}', space=vmem, size = 0x400, scoped, tag = 'output window, operand 2, single buffered']
    %12 = vsyncpa [#allocation5], 0
    %13 = vsyncpa [#allocation8], 0
    %14 = vsyncpa [#allocation6], 0
    %15 = vsyncpa [#allocation12], 0
    // Predicated region
    $region2: #{tpu_custom_call.1} parent=1 // pred_check
      _
    $region3: #{tpu_custom_call.1} parent=1 // pred_check_branch
      %17 = sbr.rel (0) target = $region5
    $region4: #{tpu_custom_call.1} parent=1 // pred_region
      %19 = vsyncadd [#allocation5], 0
      %s21 = sshll.u32 %s0, 4
      %s22 = int_to_ptr.hbm [resolvable:$true] %s21
      %s23 = sshll.u32 [#allocation4], 4
      %s24 = int_to_ptr.vmem [resolvable:$true] %s23
      %26 = dma.hbm_to_vmem [thread:$0]  %s22, 512, %s24, [#allocation5]
    $region5: #{tpu_custom_call.1} parent=1 // pred_fallthru
      _
    // Predicated region
    $region6: #{tpu_custom_call.1} parent=1 // pred_check
      _
    $region7: #{tpu_custom_call.1} parent=1 // pred_check_branch
      %28 = sbr.rel (0) target = $region9
    $region8: #{tpu_custom_call.1} parent=1 // pred_region
      %30 = vsyncadd [#allocation8], 0
      %s32 = sshll.u32 %s1, 4
      %s33 = int_to_ptr.hbm [resolvable:$true] %s32
      %s34 = sshll.u32 [#allocation7], 4
      %s35 = int_to_ptr.vmem [resolvable:$true] %s34
      %37 = dma.hbm_to_vmem [thread:$0]  %s33, 16, %s35, [#allocation8]
    $region9: #{tpu_custom_call.1} parent=1 // pred_fallthru
      _
    // Predicated region
    $region10: #{tpu_custom_call.1} parent=1 // pred_check
      _
    $region11: #{tpu_custom_call.1} parent=1 // pred_check_branch
      %39 = sbr.rel (0) target = $region13
    $region12: #{tpu_custom_call.1} parent=1 // pred_region
      _
    $region13: #{tpu_custom_call.1} parent=1 // pred_fallthru
      _
    // Predicated region
    $region14: #{tpu_custom_call.1} parent=1 // pred_check
      _
    $region15: #{tpu_custom_call.1} parent=1 // pred_check_branch
      %41 = sbr.rel (0) target = $region17
    $region16: #{tpu_custom_call.1} parent=1 // pred_region
      %43 = vsyncadd [#allocation8], 0
      %s44 = sshll.u32 %s3, 4
      %s45 = int_to_ptr.hbm [resolvable:$true] %s44
      %s46 = sshll.u32 [#allocation9], 4
      %s47 = int_to_ptr.vmem [resolvable:$true] %s46
      %52 = dma.hbm_to_vmem [thread:$0]  %s45, 8192, %s47, [#allocation8], 512, 512, 32
    $region17: #{tpu_custom_call.1} parent=1 // pred_fallthru
      _
    // Predicated region
    $region18: #{tpu_custom_call.1} parent=1 // pred_check
      _
    $region19: #{tpu_custom_call.1} parent=1 // pred_check_branch
      %54 = sbr.rel (0) target = $region21
    $region20: #{tpu_custom_call.1} parent=1 // pred_region
      %56 = dma.done [#allocation5], 512
    $region21: #{tpu_custom_call.1} parent=1 // pred_fallthru
      _
    // Predicated region
    $region22: #{tpu_custom_call.1} parent=1 // pred_check
      _
    $region23: #{tpu_custom_call.1} parent=1 // pred_check_branch
      %58 = sbr.rel (0) target = $region25
    $region24: #{tpu_custom_call.1} parent=1 // pred_region
      %60 = dma.done [#allocation8], 16
    $region25: #{tpu_custom_call.1} parent=1 // pred_fallthru
      _
    // Predicated region
    $region26: #{tpu_custom_call.1} parent=1 // pred_check
      _
    $region27: #{tpu_custom_call.1} parent=1 // pred_check_branch
      %62 = sbr.rel (0) target = $region29
    $region28: #{tpu_custom_call.1} parent=1 // pred_region
      %64 = dma.done [#allocation8], 8192
    $region29: #{tpu_custom_call.1} parent=1 // pred_fallthru
      _
    %p65 = scmp.eq.s32.totalorder 0, 0
    // Predicated region
    $region30: #{tpu_custom_call.1} parent=1 // pred_check
      %p66 = pneg %p65
    $region31: #{tpu_custom_call.1} parent=1 // pred_check_branch
      %68 = sbr.rel (%p66) target = $region33
    $region32: #{tpu_custom_call.1} parent=1 // pred_region
      %v69 = vld [vmem:[#allocation7] sm:$0x1]
      %70 = vst [vmem:[#allocation2] sm:$0x1] %v69
      %v71 = vld [vmem:[%s2] sm:$0x1]
      %72 = vst [vmem:[#allocation3] sm:$0x1] %v71
    $region33: #{tpu_custom_call.1} parent=1 // pred_fallthru
      _
    %v73 = vld [vmem:[#allocation2] sm:$0x1]
    %v74 = vld [vmem:[#allocation3] sm:$0x1]
    %v75 = vld [vmem:[#allocation4] ss:$8 sm:$0xf]
    %v76 = vld [vmem:[#allocation9] sm:$0xff]
    %v77 = vld [vmem:[#allocation9 + $0x8] sm:$0xff]
    %v78 = vld [vmem:[#allocation9 + $0x10] sm:$0xff]
    %v79 = vld [vmem:[#allocation9 + $0x18] sm:$0xff]
    %v80 = vld [vmem:[#allocation9 + $0x20] sm:$0xff]
    %v81 = vld [vmem:[#allocation9 + $0x28] sm:$0xff]
    %v82 = vld [vmem:[#allocation9 + $0x30] sm:$0xff]
    %v83 = vld [vmem:[#allocation9 + $0x38] sm:$0xff]
    %v84 = vld [vmem:[#allocation9 + $0x40] sm:$0xff]
    %v85 = vld [vmem:[#allocation9 + $0x48] sm:$0xff]
    %v86 = vld [vmem:[#allocation9 + $0x50] sm:$0xff]
    %v87 = vld [vmem:[#allocation9 + $0x58] sm:$0xff]
    %v88 = vld [vmem:[#allocation9 + $0x60] sm:$0xff]
    %v89 = vld [vmem:[#allocation9 + $0x68] sm:$0xff]
    %v90 = vld [vmem:[#allocation9 + $0x70] sm:$0xff]
    %v91 = vld [vmem:[#allocation9 + $0x78] sm:$0xff]
    %v92 = vld [vmem:[#allocation9 + $0x80] sm:$0xff]
    %v93 = vld [vmem:[#allocation9 + $0x88] sm:$0xff]
    %v94 = vld [vmem:[#allocation9 + $0x90] sm:$0xff]
    %v95 = vld [vmem:[#allocation9 + $0x98] sm:$0xff]
    %v96 = vld [vmem:[#allocation9 + $0xa0] sm:$0xff]
    %v97 = vld [vmem:[#allocation9 + $0xa8] sm:$0xff]
    %v98 = vld [vmem:[#allocation9 + $0xb0] sm:$0xff]
    %v99 = vld [vmem:[#allocation9 + $0xb8] sm:$0xff]
    %v100 = vld [vmem:[#allocation9 + $0xc0] sm:$0xff]
    %v101 = vld [vmem:[#allocation9 + $0xc8] sm:$0xff]
    %v102 = vld [vmem:[#allocation9 + $0xd0] sm:$0xff]
    %v103 = vld [vmem:[#allocation9 + $0xd8] sm:$0xff]
    %v104 = vld [vmem:[#allocation9 + $0xe0] sm:$0xff]
    %v105 = vld [vmem:[#allocation9 + $0xe8] sm:$0xff]
    %v106 = vld [vmem:[#allocation9 + $0xf0] sm:$0xff]
    %v107 = vld [vmem:[#allocation9 + $0xf8] sm:$0xff]
    %v108 = vld [vmem:[#allocation9 + $0x100] sm:$0xff]
    %v109 = vld [vmem:[#allocation9 + $0x108] sm:$0xff]
    %v110 = vld [vmem:[#allocation9 + $0x110] sm:$0xff]
    %v111 = vld [vmem:[#allocation9 + $0x118] sm:$0xff]
    %v112 = vld [vmem:[#allocation9 + $0x120] sm:$0xff]
    %v113 = vld [vmem:[#allocation9 + $0x128] sm:$0xff]
    %v114 = vld [vmem:[#allocation9 + $0x130] sm:$0xff]
    %v115 = vld [vmem:[#allocation9 + $0x138] sm:$0xff]
    %v116 = vld [vmem:[#allocation9 + $0x140] sm:$0xff]
    %v117 = vld [vmem:[#allocation9 + $0x148] sm:$0xff]
    %v118 = vld [vmem:[#allocation9 + $0x150] sm:$0xff]
    %v119 = vld [vmem:[#allocation9 + $0x158] sm:$0xff]
    %v120 = vld [vmem:[#allocation9 + $0x160] sm:$0xff]
    %v121 = vld [vmem:[#allocation9 + $0x168] sm:$0xff]
    %v122 = vld [vmem:[#allocation9 + $0x170] sm:$0xff]
    %v123 = vld [vmem:[#allocation9 + $0x178] sm:$0xff]
    %v124 = vld [vmem:[#allocation9 + $0x180] sm:$0xff]
    %v125 = vld [vmem:[#allocation9 + $0x188] sm:$0xff]
    %v126 = vld [vmem:[#allocation9 + $0x190] sm:$0xff]
    %v127 = vld [vmem:[#allocation9 + $0x198] sm:$0xff]
    %v128 = vld [vmem:[#allocation9 + $0x1a0] sm:$0xff]
    %v129 = vld [vmem:[#allocation9 + $0x1a8] sm:$0xff]
    %v130 = vld [vmem:[#allocation9 + $0x1b0] sm:$0xff]
    %v131 = vld [vmem:[#allocation9 + $0x1b8] sm:$0xff]
    %v132 = vld [vmem:[#allocation9 + $0x1c0] sm:$0xff]
    %v133 = vld [vmem:[#allocation9 + $0x1c8] sm:$0xff]
    %v134 = vld [vmem:[#allocation9 + $0x1d0] sm:$0xff]
    %v135 = vld [vmem:[#allocation9 + $0x1d8] sm:$0xff]
    %v136 = vld [vmem:[#allocation9 + $0x1e0] sm:$0xff]
    %v137 = vld [vmem:[#allocation9 + $0x1e8] sm:$0xff]
    %v138 = vld [vmem:[#allocation9 + $0x1f0] sm:$0xff]
    %v139 = vld [vmem:[#allocation9 + $0x1f8] sm:$0xff]
    %140 = vmatpush.msra.mxu0 %v136
    %141 = vmatpush.msra.mxu0 %v132
    %142 = vmatpush.msra.mxu0 %v128
    %143 = vmatpush.msra.mxu0 %v124
    %144 = vmatpush.msra.mxu0 %v120
    %145 = vmatpush.msra.mxu0 %v116
    %146 = vmatpush.msra.mxu0 %v112
    %147 = vmatpush.msra.mxu0 %v108
    %148 = vmatpush.msra.mxu0 %v104
    %149 = vmatpush.msra.mxu0 %v100
    %150 = vmatpush.msra.mxu0 %v96
    %151 = vmatpush.msra.mxu0 %v92
    %152 = vmatpush.msra.mxu0 %v88
    %153 = vmatpush.msra.mxu0 %v84
    %154 = vmatpush.msra.mxu0 %v80
    %155 = vmatpush.msra.mxu0 %v76
    %156 = vmatmul.f32.gmra.mxu0 %v73
    %v157 = vpop.f32.mrf.mxu0
    %v158 = vadd.f32 0.0, %v157
    %159 = vdwg.mxu0
    %160 = vmatpush.msra.mxu0 %v137
    %161 = vmatpush.msra.mxu0 %v133
    %162 = vmatpush.msra.mxu0 %v129
    %163 = vmatpush.msra.mxu0 %v125
    %164 = vmatpush.msra.mxu0 %v121
    %165 = vmatpush.msra.mxu0 %v117
    %166 = vmatpush.msra.mxu0 %v113
    %167 = vmatpush.msra.mxu0 %v109
    %168 = vmatpush.msra.mxu0 %v105
    %169 = vmatpush.msra.mxu0 %v101
    %170 = vmatpush.msra.mxu0 %v97
    %171 = vmatpush.msra.mxu0 %v93
    %172 = vmatpush.msra.mxu0 %v89
    %173 = vmatpush.msra.mxu0 %v85
    %174 = vmatpush.msra.mxu0 %v81
    %175 = vmatpush.msra.mxu0 %v77
    %176 = vmatmul.f32.gmra.mxu0 %v73
    %v177 = vpop.f32.mrf.mxu0
    %v178 = vadd.f32 0.0, %v177
    %179 = vdwg.mxu0
    %180 = vmatpush.msra.mxu0 %v138
    %181 = vmatpush.msra.mxu0 %v134
    %182 = vmatpush.msra.mxu0 %v130
    %183 = vmatpush.msra.mxu0 %v126
    %184 = vmatpush.msra.mxu0 %v122
    %185 = vmatpush.msra.mxu0 %v118
    %186 = vmatpush.msra.mxu0 %v114
    %187 = vmatpush.msra.mxu0 %v110
    %188 = vmatpush.msra.mxu0 %v106
    %189 = vmatpush.msra.mxu0 %v102
    %190 = vmatpush.msra.mxu0 %v98
    %191 = vmatpush.msra.mxu0 %v94
    %192 = vmatpush.msra.mxu0 %v90
    %193 = vmatpush.msra.mxu0 %v86
    %194 = vmatpush.msra.mxu0 %v82
    %195 = vmatpush.msra.mxu0 %v78
    %196 = vmatmul.f32.gmra.mxu0 %v73
    %v197 = vpop.f32.mrf.mxu0
    %v198 = vadd.f32 0.0, %v197
    %199 = vdwg.mxu0
    %200 = vmatpush.msra.mxu0 %v139
    %201 = vmatpush.msra.mxu0 %v135
    %202 = vmatpush.msra.mxu0 %v131
    %203 = vmatpush.msra.mxu0 %v127
    %204 = vmatpush.msra.mxu0 %v123
    %205 = vmatpush.msra.mxu0 %v119
    %206 = vmatpush.msra.mxu0 %v115
    %207 = vmatpush.msra.mxu0 %v111
    %208 = vmatpush.msra.mxu0 %v107
    %209 = vmatpush.msra.mxu0 %v103
    %210 = vmatpush.msra.mxu0 %v99
    %211 = vmatpush.msra.mxu0 %v95
    %212 = vmatpush.msra.mxu0 %v91
    %213 = vmatpush.msra.mxu0 %v87
    %214 = vmatpush.msra.mxu0 %v83
    %215 = vmatpush.msra.mxu0 %v79
    %216 = vmatmul.f32.gmra.mxu0 %v73
    %v217 = vpop.f32.mrf.mxu0
    %v218 = vadd.f32 0.0, %v217
    %219 = vdwg.mxu0
    %v224 = vrot.slane %v178, 7
    %v225 = vrot.slane %v198, 6
    %v226 = vrot.slane %v218, 5
    %vm227 = vcmask 1040384
    %v228 = vsel %vm227, %v158, %v224
    %vm229 = vcmask 1042434
    %v230 = vsel %vm229, %v225, %v226
    %vm231 = vcmask 1041408
    %v232 = vsel %vm231, %v228, %v230
    %v234 = vadd.f32 %v75, %v232
    %v235 = vxor.u32 %v234, 2147483648
    %v236 = vmul.f32 %v235, 1.442695
    %v237 = vpow.pop %v236
    %v238 = vadd.f32 %v237, 1.0
    %v239 = vrcp.pop %v238
    %v240 = vmul.f32 %v238, %v239
    %v241 = vsub.f32 1.0, %v240
    %v242 = vmul.f32 %v239, %v241
    %v243 = vadd.f32 %v239, %v242
    %vm244 = vweird.f32 %v238
    %vm245 = vweird.f32 %v239
    %vm246 = vmor %vm244, %vm245
    %v247 = vsel %vm246, %v239, %v243
    %v248 = vand.u32 2147483647, %v238
    %vm249 = vcmp.eq.f32.partialorder %v248, 8.507059e+37
    %v250 = vand.u32 %v238, 2147483648
    %v251 = vor.u32 1.1754944e-38, %v250
    %v252 = vsel %vm249, %v251, %v247
    %v253 = vmul.f32 1.0, %v252
    %v255 = vrot.slane %v234, 1
    %v257 = vxor.u32 %v255, 2147483648
    %v258 = vmul.f32 %v257, 1.442695
    %v259 = vpow.pop %v258
    %v260 = vadd.f32 %v259, 1.0
    %v261 = vrcp.pop %v260
    %v262 = vmul.f32 %v260, %v261
    %v263 = vsub.f32 1.0, %v262
    %v264 = vmul.f32 %v261, %v263
    %v265 = vadd.f32 %v261, %v264
    %vm266 = vweird.f32 %v260
    %vm267 = vweird.f32 %v261
    %vm268 = vmor %vm266, %vm267
    %v269 = vsel %vm268, %v261, %v265
    %v270 = vand.u32 2147483647, %v260
    %vm271 = vcmp.eq.f32.partialorder %v270, 8.507059e+37
    %v272 = vand.u32 %v260, 2147483648
    %v273 = vor.u32 1.1754944e-38, %v272
    %v274 = vsel %vm271, %v273, %v269
    %v275 = vmul.f32 1.0, %v274
    %v276 = vrot.slane %v234, 2
    %v278 = vtanh.pop %v276
    %v279 = vrot.slane %v234, 3
    %v281 = vxor.u32 %v279, 2147483648
    %v282 = vmul.f32 %v281, 1.442695
    %v283 = vpow.pop %v282
    %v284 = vadd.f32 %v283, 1.0
    %v285 = vrcp.pop %v284
    %v286 = vmul.f32 %v284, %v285
    %v287 = vsub.f32 1.0, %v286
    %v288 = vmul.f32 %v285, %v287
    %v289 = vadd.f32 %v285, %v288
    %vm290 = vweird.f32 %v284
    %vm291 = vweird.f32 %v285
    %vm292 = vmor %vm290, %vm291
    %v293 = vsel %vm292, %v285, %v289
    %v294 = vand.u32 2147483647, %v284
    %vm295 = vcmp.eq.f32.partialorder %v294, 8.507059e+37
    %v296 = vand.u32 %v284, 2147483648
    %v297 = vor.u32 1.1754944e-38, %v296
    %v298 = vsel %vm295, %v297, %v293
    %v299 = vmul.f32 1.0, %v298
    %v300 = vmul.f32 %v275, %v74
    %v301 = vmul.f32 %v253, %v278
    %v302 = vadd.f32 %v300, %v301
    %v303 = vtanh.pop %v302
    %v304 = vmul.f32 %v299, %v303
    %305 = vst [vmem:[#allocation10] sm:$0x1] %v304
    %s306 = smul.u32 0, 8
    %p307 = scmp.lt.s32.totalorder %s306, 1
    %s308 = scalar_select %p307, 1, 0
    %v309 = vstv %s308
    %vm310 = vcmp.eq.s32.totalorder %v309, 1
    %v311 = vsel %vm310, %v304, %v73
    %v312 = vsel %vm310, %v302, %v74
    %s313 = scalar_lea.vmem [#allocation4], 1
    %v314 = vld [vmem:[%s313] ss:$8 sm:$0xf]
    %v315 = vld [vmem:[#allocation9] sm:$0xff]
    %v316 = vld [vmem:[#allocation9 + $0x8] sm:$0xff]
    %v317 = vld [vmem:[#allocation9 + $0x10] sm:$0xff]
    %v318 = vld [vmem:[#allocation9 + $0x18] sm:$0xff]
    %v319 = vld [vmem:[#allocation9 + $0x20] sm:$0xff]
    %v320 = vld [vmem:[#allocation9 + $0x28] sm:$0xff]
    %v321 = vld [vmem:[#allocation9 + $0x30] sm:$0xff]
    %v322 = vld [vmem:[#allocation9 + $0x38] sm:$0xff]
    %v323 = vld [vmem:[#allocation9 + $0x40] sm:$0xff]
    %v324 = vld [vmem:[#allocation9 + $0x48] sm:$0xff]
    %v325 = vld [vmem:[#allocation9 + $0x50] sm:$0xff]
    %v326 = vld [vmem:[#allocation9 + $0x58] sm:$0xff]
    %v327 = vld [vmem:[#allocation9 + $0x60] sm:$0xff]
    %v328 = vld [vmem:[#allocation9 + $0x68] sm:$0xff]
    %v329 = vld [vmem:[#allocation9 + $0x70] sm:$0xff]
    %v330 = vld [vmem:[#allocation9 + $0x78] sm:$0xff]
    %v331 = vld [vmem:[#allocation9 + $0x80] sm:$0xff]
    %v332 = vld [vmem:[#allocation9 + $0x88] sm:$0xff]
    %v333 = vld [vmem:[#allocation9 + $0x90] sm:$0xff]
    %v334 = vld [vmem:[#allocation9 + $0x98] sm:$0xff]
    %v335 = vld [vmem:[#allocation9 + $0xa0] sm:$0xff]
    %v336 = vld [vmem:[#allocation9 + $0xa8] sm:$0xff]
    %v337 = vld [vmem:[#allocation9 + $0xb0] sm:$0xff]
    %v338 = vld [vmem:[#allocation9 + $0xb8] sm:$0xff]
    %v339 = vld [vmem:[#allocation9 + $0xc0] sm:$0xff]
    %v340 = vld [vmem:[#allocation9 + $0xc8] sm:$0xff]
    %v341 = vld [vmem:[#allocation9 + $0xd0] sm:$0xff]
    %v342 = vld [vmem:[#allocation9 + $0xd8] sm:$0xff]
    %v343 = vld [vmem:[#allocation9 + $0xe0] sm:$0xff]
    %v344 = vld [vmem:[#allocation9 + $0xe8] sm:$0xff]
    %v345 = vld [vmem:[#allocation9 + $0xf0] sm:$0xff]
    %v346 = vld [vmem:[#allocation9 + $0xf8] sm:$0xff]
    %v347 = vld [vmem:[#allocation9 + $0x100] sm:$0xff]
    %v348 = vld [vmem:[#allocation9 + $0x108] sm:$0xff]
    %v349 = vld [vmem:[#allocation9 + $0x110] sm:$0xff]
    %v350 = vld [vmem:[#allocation9 + $0x118] sm:$0xff]
    %v351 = vld [vmem:[#allocation9 + $0x120] sm:$0xff]
    %v352 = vld [vmem:[#allocation9 + $0x128] sm:$0xff]
    %v353 = vld [vmem:[#allocation9 + $0x130] sm:$0xff]
    %v354 = vld [vmem:[#allocation9 + $0x138] sm:$0xff]
    %v355 = vld [vmem:[#allocation9 + $0x140] sm:$0xff]
    %v356 = vld [vmem:[#allocation9 + $0x148] sm:$0xff]
    %v357 = vld [vmem:[#allocation9 + $0x150] sm:$0xff]
    %v358 = vld [vmem:[#allocation9 + $0x158] sm:$0xff]
    %v359 = vld [vmem:[#allocation9 + $0x160] sm:$0xff]
    %v360 = vld [vmem:[#allocation9 + $0x168] sm:$0xff]
    %v361 = vld [vmem:[#allocation9 + $0x170] sm:$0xff]
    %v362 = vld [vmem:[#allocation9 + $0x178] sm:$0xff]
    %v363 = vld [vmem:[#allocation9 + $0x180] sm:$0xff]
    %v364 = vld [vmem:[#allocation9 + $0x188] sm:$0xff]
    %v365 = vld [vmem:[#allocation9 + $0x190] sm:$0xff]
    %v366 = vld [vmem:[#allocation9 + $0x198] sm:$0xff]
    %v367 = vld [vmem:[#allocation9 + $0x1a0] sm:$0xff]
    %v368 = vld [vmem:[#allocation9 + $0x1a8] sm:$0xff]
    %v369 = vld [vmem:[#allocation9 + $0x1b0] sm:$0xff]
    %v370 = vld [vmem:[#allocation9 + $0x1b8] sm:$0xff]
    %v371 = vld [vmem:[#allocation9 + $0x1c0] sm:$0xff]
    %v372 = vld [vmem:[#allocation9 + $0x1c8] sm:$0xff]
    %v373 = vld [vmem:[#allocation9 + $0x1d0] sm:$0xff]
    %v374 = vld [vmem:[#allocation9 + $0x1d8] sm:$0xff]
    %v375 = vld [vmem:[#allocation9 + $0x1e0] sm:$0xff]
    %v376 = vld [vmem:[#allocation9 + $0x1e8] sm:$0xff]
    %v377 = vld [vmem:[#allocation9 + $0x1f0] sm:$0xff]
    %v378 = vld [vmem:[#allocation9 + $0x1f8] sm:$0xff]
    %379 = vmatpush.msra.mxu0 %v375
    %380 = vmatpush.msra.mxu0 %v371
    %381 = vmatpush.msra.mxu0 %v367
    %382 = vmatpush.msra.mxu0 %v363
    %383 = vmatpush.msra.mxu0 %v359
    %384 = vmatpush.msra.mxu0 %v355
    %385 = vmatpush.msra.mxu0 %v351
    %386 = vmatpush.msra.mxu0 %v347
    %387 = vmatpush.msra.mxu0 %v343
    %388 = vmatpush.msra.mxu0 %v339
    %389 = vmatpush.msra.mxu0 %v335
    %390 = vmatpush.msra.mxu0 %v331
    %391 = vmatpush.msra.mxu0 %v327
    %392 = vmatpush.msra.mxu0 %v323
    %393 = vmatpush.msra.mxu0 %v319
    %394 = vmatpush.msra.mxu0 %v315
    %395 = vmatmul.f32.gmra.mxu0 %v311
    %v396 = vpop.f32.mrf.mxu0
    %v397 = vadd.f32 0.0, %v396
    %398 = vdwg.mxu0
    %399 = vmatpush.msra.mxu0 %v376
    %400 = vmatpush.msra.mxu0 %v372
    %401 = vmatpush.msra.mxu0 %v368
    %402 = vmatpush.msra.mxu0 %v364
    %403 = vmatpush.msra.mxu0 %v360
    %404 = vmatpush.msra.mxu0 %v356
    %405 = vmatpush.msra.mxu0 %v352
    %406 = vmatpush.msra.mxu0 %v348
    %407 = vmatpush.msra.mxu0 %v344
    %408 = vmatpush.msra.mxu0 %v340
    %409 = vmatpush.msra.mxu0 %v336
    %410 = vmatpush.msra.mxu0 %v332
    %411 = vmatpush.msra.mxu0 %v328
    %412 = vmatpush.msra.mxu0 %v324
    %413 = vmatpush.msra.mxu0 %v320
    %414 = vmatpush.msra.mxu0 %v316
    %415 = vmatmul.f32.gmra.mxu0 %v311
    %v416 = vpop.f32.mrf.mxu0
    %v417 = vadd.f32 0.0, %v416
    %418 = vdwg.mxu0
    %419 = vmatpush.msra.mxu0 %v377
    %420 = vmatpush.msra.mxu0 %v373
    %421 = vmatpush.msra.mxu0 %v369
    %422 = vmatpush.msra.mxu0 %v365
    %423 = vmatpush.msra.mxu0 %v361
    %424 = vmatpush.msra.mxu0 %v357
    %425 = vmatpush.msra.mxu0 %v353
    %426 = vmatpush.msra.mxu0 %v349
    %427 = vmatpush.msra.mxu0 %v345
    %428 = vmatpush.msra.mxu0 %v341
    %429 = vmatpush.msra.mxu0 %v337
    %430 = vmatpush.msra.mxu0 %v333
    %431 = vmatpush.msra.mxu0 %v329
    %432 = vmatpush.msra.mxu0 %v325
    %433 = vmatpush.msra.mxu0 %v321
    %434 = vmatpush.msra.mxu0 %v317
    %435 = vmatmul.f32.gmra.mxu0 %v311
    %v436 = vpop.f32.mrf.mxu0
    %v437 = vadd.f32 0.0, %v436
    %438 = vdwg.mxu0
    %439 = vmatpush.msra.mxu0 %v378
    %440 = vmatpush.msra.mxu0 %v374
    %441 = vmatpush.msra.mxu0 %v370
    %442 = vmatpush.msra.mxu0 %v366
    %443 = vmatpush.msra.mxu0 %v362
    %444 = vmatpush.msra.mxu0 %v358
    %445 = vmatpush.msra.mxu0 %v354
    %446 = vmatpush.msra.mxu0 %v350
    %447 = vmatpush.msra.mxu0 %v346
    %448 = vmatpush.msra.mxu0 %v342
    %449 = vmatpush.msra.mxu0 %v338
    %450 = vmatpush.msra.mxu0 %v334
    %451 = vmatpush.msra.mxu0 %v330
    %452 = vmatpush.msra.mxu0 %v326
    %453 = vmatpush.msra.mxu0 %v322
    %454 = vmatpush.msra.mxu0 %v318
    %455 = vmatmul.f32.gmra.mxu0 %v311
    %v456 = vpop.f32.mrf.mxu0
    %v457 = vadd.f32 0.0, %v456
    %458 = vdwg.mxu0
    %v463 = vrot.slane %v417, 7
    %v464 = vrot.slane %v437, 6
    %v465 = vrot.slane %v457, 5
    %v466 = vsel %vm227, %v397, %v463
    %v467 = vsel %vm229, %v464, %v465
    %v468 = vsel %vm231, %v466, %v467
    %v470 = vadd.f32 %v314, %v468
    %v471 = vxor.u32 %v470, 2147483648
    %v472 = vmul.f32 %v471, 1.442695
    %v473 = vpow.pop %v472
    %v474 = vadd.f32 %v473, 1.0
    %v475 = vrcp.pop %v474
    %v476 = vmul.f32 %v474, %v475
    %v477 = vsub.f32 1.0, %v476
    %v478 = vmul.f32 %v475, %v477
    %v479 = vadd.f32 %v475, %v478
    %vm480 = vweird.f32 %v474
    %vm481 = vweird.f32 %v475
    %vm482 = vmor %vm480, %vm481
    %v483 = vsel %vm482, %v475, %v479
    %v484 = vand.u32 2147483647, %v474
    %vm485 = vcmp.eq.f32.partialorder %v484, 8.507059e+37
    %v486 = vand.u32 %v474, 2147483648
    %v487 = vor.u32 1.1754944e-38, %v486
    %v488 = vsel %vm485, %v487, %v483
    %v489 = vmul.f32 1.0, %v488
    %v491 = vrot.slane %v470, 1
    %v493 = vxor.u32 %v491, 2147483648
    %v494 = vmul.f32 %v493, 1.442695
    %v495 = vpow.pop %v494
    %v496 = vadd.f32 %v495, 1.0
    %v497 = vrcp.pop %v496
    %v498 = vmul.f32 %v496, %v497
    %v499 = vsub.f32 1.0, %v498
    %v500 = vmul.f32 %v497, %v499
    %v501 = vadd.f32 %v497, %v500
    %vm502 = vweird.f32 %v496
    %vm503 = vweird.f32 %v497
    %vm504 = vmor %vm502, %vm503
    %v505 = vsel %vm504, %v497, %v501
    %v506 = vand.u32 2147483647, %v496
    %vm507 = vcmp.eq.f32.partialorder %v506, 8.507059e+37
    %v508 = vand.u32 %v496, 2147483648
    %v509 = vor.u32 1.1754944e-38, %v508
    %v510 = vsel %vm507, %v509, %v505
    %v511 = vmul.f32 1.0, %v510
    %v512 = vrot.slane %v470, 2
    %v514 = vtanh.pop %v512
    %v515 = vrot.slane %v470, 3
    %v517 = vxor.u32 %v515, 2147483648
    %v518 = vmul.f32 %v517, 1.442695
    %v519 = vpow.pop %v518
    %v520 = vadd.f32 %v519, 1.0
    %v521 = vrcp.pop %v520
    %v522 = vmul.f32 %v520, %v521
    %v523 = vsub.f32 1.0, %v522
    %v524 = vmul.f32 %v521, %v523
    %v525 = vadd.f32 %v521, %v524
    %vm526 = vweird.f32 %v520
    %vm527 = vweird.f32 %v521
    %vm528 = vmor %vm526, %vm527
    %v529 = vsel %vm528, %v521, %v525
    %v530 = vand.u32 2147483647, %v520
    %vm531 = vcmp.eq.f32.partialorder %v530, 8.507059e+37
    %v532 = vand.u32 %v520, 2147483648
    %v533 = vor.u32 1.1754944e-38, %v532
    %v534 = vsel %vm531, %v533, %v529
    %v535 = vmul.f32 1.0, %v534
    %v536 = vmul.f32 %v511, %v312
    %v537 = vmul.f32 %v489, %v514
    %v538 = vadd.f32 %v536, %v537
    %v539 = vtanh.pop %v538
    %v540 = vmul.f32 %v535, %v539
    %541 = vst [vmem:[#allocation10 + $0x1] sm:$0x1] %v540
    %s542 = sadd.s32 %s306, 1
    %p543 = scmp.lt.s32.totalorder %s542, 1
    %s544 = scalar_select %p543, 1, 0
    %v545 = vstv %s544
    %vm546 = vcmp.eq.s32.totalorder %v545, 1
    %v547 = vsel %vm546, %v540, %v311
    %v548 = vsel %vm546, %v538, %v312
    %s549 = scalar_lea.vmem [#allocation4], 2
    %v550 = vld [vmem:[%s549] ss:$8 sm:$0xf]
    %v551 = vld [vmem:[#allocation9] sm:$0xff]
    %v552 = vld [vmem:[#allocation9 + $0x8] sm:$0xff]
    %v553 = vld [vmem:[#allocation9 + $0x10] sm:$0xff]
    %v554 = vld [vmem:[#allocation9 + $0x18] sm:$0xff]
    %v555 = vld [vmem:[#allocation9 + $0x20] sm:$0xff]
    %v556 = vld [vmem:[#allocation9 + $0x28] sm:$0xff]
    %v557 = vld [vmem:[#allocation9 + $0x30] sm:$0xff]
    %v558 = vld [vmem:[#allocation9 + $0x38] sm:$0xff]
    %v559 = vld [vmem:[#allocation9 + $0x40] sm:$0xff]
    %v560 = vld [vmem:[#allocation9 + $0x48] sm:$0xff]
    %v561 = vld [vmem:[#allocation9 + $0x50] sm:$0xff]
    %v562 = vld [vmem:[#allocation9 + $0x58] sm:$0xff]
    %v563 = vld [vmem:[#allocation9 + $0x60] sm:$0xff]
    %v564 = vld [vmem:[#allocation9 + $0x68] sm:$0xff]
    %v565 = vld [vmem:[#allocation9 + $0x70] sm:$0xff]
    %v566 = vld [vmem:[#allocation9 + $0x78] sm:$0xff]
    %v567 = vld [vmem:[#allocation9 + $0x80] sm:$0xff]
    %v568 = vld [vmem:[#allocation9 + $0x88] sm:$0xff]
    %v569 = vld [vmem:[#allocation9 + $0x90] sm:$0xff]
    %v570 = vld [vmem:[#allocation9 + $0x98] sm:$0xff]
    %v571 = vld [vmem:[#allocation9 + $0xa0] sm:$0xff]
    %v572 = vld [vmem:[#allocation9 + $0xa8] sm:$0xff]
    %v573 = vld [vmem:[#allocation9 + $0xb0] sm:$0xff]
    %v574 = vld [vmem:[#allocation9 + $0xb8] sm:$0xff]
    %v575 = vld [vmem:[#allocation9 + $0xc0] sm:$0xff]
    %v576 = vld [vmem:[#allocation9 + $0xc8] sm:$0xff]
    %v577 = vld [vmem:[#allocation9 + $0xd0] sm:$0xff]
    %v578 = vld [vmem:[#allocation9 + $0xd8] sm:$0xff]
    %v579 = vld [vmem:[#allocation9 + $0xe0] sm:$0xff]
    %v580 = vld [vmem:[#allocation9 + $0xe8] sm:$0xff]
    %v581 = vld [vmem:[#allocation9 + $0xf0] sm:$0xff]
    %v582 = vld [vmem:[#allocation9 + $0xf8] sm:$0xff]
    %v583 = vld [vmem:[#allocation9 + $0x100] sm:$0xff]
    %v584 = vld [vmem:[#allocation9 + $0x108] sm:$0xff]
    %v585 = vld [vmem:[#allocation9 + $0x110] sm:$0xff]
    %v586 = vld [vmem:[#allocation9 + $0x118] sm:$0xff]
    %v587 = vld [vmem:[#allocation9 + $0x120] sm:$0xff]
    %v588 = vld [vmem:[#allocation9 + $0x128] sm:$0xff]
    %v589 = vld [vmem:[#allocation9 + $0x130] sm:$0xff]
    %v590 = vld [vmem:[#allocation9 + $0x138] sm:$0xff]
    %v591 = vld [vmem:[#allocation9 + $0x140] sm:$0xff]
    %v592 = vld [vmem:[#allocation9 + $0x148] sm:$0xff]
    %v593 = vld [vmem:[#allocation9 + $0x150] sm:$0xff]
    %v594 = vld [vmem:[#allocation9 + $0x158] sm:$0xff]
    %v595 = vld [vmem:[#allocation9 + $0x160] sm:$0xff]
    %v596 = vld [vmem:[#allocation9 + $0x168] sm:$0xff]
    %v597 = vld [vmem:[#allocation9 + $0x170] sm:$0xff]
    %v598 = vld [vmem:[#allocation9 + $0x178] sm:$0xff]
    %v599 = vld [vmem:[#allocation9 + $0x180] sm:$0xff]
    %v600 = vld [vmem:[#allocation9 + $0x188] sm:$0xff]
    %v601 = vld [vmem:[#allocation9 + $0x190] sm:$0xff]
    %v602 = vld [vmem:[#allocation9 + $0x198] sm:$0xff]
    %v603 = vld [vmem:[#allocation9 + $0x1a0] sm:$0xff]
    %v604 = vld [vmem:[#allocation9 + $0x1a8] sm:$0xff]
    %v605 = vld [vmem:[#allocation9 + $0x1b0] sm:$0xff]
    %v606 = vld [vmem:[#allocation9 + $0x1b8] sm:$0xff]
    %v607 = vld [vmem:[#allocation9 + $0x1c0] sm:$0xff]
    %v608 = vld [vmem:[#allocation9 + $0x1c8] sm:$0xff]
    %v609 = vld [vmem:[#allocation9 + $0x1d0] sm:$0xff]
    %v610 = vld [vmem:[#allocation9 + $0x1d8] sm:$0xff]
    %v611 = vld [vmem:[#allocation9 + $0x1e0] sm:$0xff]
    %v612 = vld [vmem:[#allocation9 + $0x1e8] sm:$0xff]
    %v613 = vld [vmem:[#allocation9 + $0x1f0] sm:$0xff]
    %v614 = vld [vmem:[#allocation9 + $0x1f8] sm:$0xff]
    %615 = vmatpush.msra.mxu0 %v611
    %616 = vmatpush.msra.mxu0 %v607
    %617 = vmatpush.msra.mxu0 %v603
    %618 = vmatpush.msra.mxu0 %v599
    %619 = vmatpush.msra.mxu0 %v595
    %620 = vmatpush.msra.mxu0 %v591
    %621 = vmatpush.msra.mxu0 %v587
    %622 = vmatpush.msra.mxu0 %v583
    %623 = vmatpush.msra.mxu0 %v579
    %624 = vmatpush.msra.mxu0 %v575
    %625 = vmatpush.msra.mxu0 %v571
    %626 = vmatpush.msra.mxu0 %v567
    %627 = vmatpush.msra.mxu0 %v563
    %628 = vmatpush.msra.mxu0 %v559
    %629 = vmatpush.msra.mxu0 %v555
    %630 = vmatpush.msra.mxu0 %v551
    %631 = vmatmul.f32.gmra.mxu0 %v547
    %v632 = vpop.f32.mrf.mxu0
    %v633 = vadd.f32 0.0, %v632
    %634 = vdwg.mxu0
    %635 = vmatpush.msra.mxu0 %v612
    %636 = vmatpush.msra.mxu0 %v608
    %637 = vmatpush.msra.mxu0 %v604
    %638 = vmatpush.msra.mxu0 %v600
    %639 = vmatpush.msra.mxu0 %v596
    %640 = vmatpush.msra.mxu0 %v592
    %641 = vmatpush.msra.mxu0 %v588
    %642 = vmatpush.msra.mxu0 %v584
    %643 = vmatpush.msra.mxu0 %v580
    %644 = vmatpush.msra.mxu0 %v576
    %645 = vmatpush.msra.mxu0 %v572
    %646 = vmatpush.msra.mxu0 %v568
    %647 = vmatpush.msra.mxu0 %v564
    %648 = vmatpush.msra.mxu0 %v560
    %649 = vmatpush.msra.mxu0 %v556
    %650 = vmatpush.msra.mxu0 %v552
    %651 = vmatmul.f32.gmra.mxu0 %v547
    %v652 = vpop.f32.mrf.mxu0
    %v653 = vadd.f32 0.0, %v652
    %654 = vdwg.mxu0
    %655 = vmatpush.msra.mxu0 %v613
    %656 = vmatpush.msra.mxu0 %v609
    %657 = vmatpush.msra.mxu0 %v605
    %658 = vmatpush.msra.mxu0 %v601
    %659 = vmatpush.msra.mxu0 %v597
    %660 = vmatpush.msra.mxu0 %v593
    %661 = vmatpush.msra.mxu0 %v589
    %662 = vmatpush.msra.mxu0 %v585
    %663 = vmatpush.msra.mxu0 %v581
    %664 = vmatpush.msra.mxu0 %v577
    %665 = vmatpush.msra.mxu0 %v573
    %666 = vmatpush.msra.mxu0 %v569
    %667 = vmatpush.msra.mxu0 %v565
    %668 = vmatpush.msra.mxu0 %v561
    %669 = vmatpush.msra.mxu0 %v557
    %670 = vmatpush.msra.mxu0 %v553
    %671 = vmatmul.f32.gmra.mxu0 %v547
    %v672 = vpop.f32.mrf.mxu0
    %v673 = vadd.f32 0.0, %v672
    %674 = vdwg.mxu0
    %675 = vmatpush.msra.mxu0 %v614
    %676 = vmatpush.msra.mxu0 %v610
    %677 = vmatpush.msra.mxu0 %v606
    %678 = vmatpush.msra.mxu0 %v602
    %679 = vmatpush.msra.mxu0 %v598
    %680 = vmatpush.msra.mxu0 %v594
    %681 = vmatpush.msra.mxu0 %v590
    %682 = vmatpush.msra.mxu0 %v586
    %683 = vmatpush.msra.mxu0 %v582
    %684 = vmatpush.msra.mxu0 %v578
    %685 = vmatpush.msra.mxu0 %v574
    %686 = vmatpush.msra.mxu0 %v570
    %687 = vmatpush.msra.mxu0 %v566
    %688 = vmatpush.msra.mxu0 %v562
    %689 = vmatpush.msra.mxu0 %v558
    %690 = vmatpush.msra.mxu0 %v554
    %691 = vmatmul.f32.gmra.mxu0 %v547
    %v692 = vpop.f32.mrf.mxu0
    %v693 = vadd.f32 0.0, %v692
    %694 = vdwg.mxu0
    %v699 = vrot.slane %v653, 7
    %v700 = vrot.slane %v673, 6
    %v701 = vrot.slane %v693, 5
    %v702 = vsel %vm227, %v633, %v699
    %v703 = vsel %vm229, %v700, %v701
    %v704 = vsel %vm231, %v702, %v703
    %v706 = vadd.f32 %v550, %v704
    %v707 = vxor.u32 %v706, 2147483648
    %v708 = vmul.f32 %v707, 1.442695
    %v709 = vpow.pop %v708
    %v710 = vadd.f32 %v709, 1.0
    %v711 = vrcp.pop %v710
    %v712 = vmul.f32 %v710, %v711
    %v713 = vsub.f32 1.0, %v712
    %v714 = vmul.f32 %v711, %v713
    %v715 = vadd.f32 %v711, %v714
    %vm716 = vweird.f32 %v710
    %vm717 = vweird.f32 %v711
    %vm718 = vmor %vm716, %vm717
    %v719 = vsel %vm718, %v711, %v715
    %v720 = vand.u32 2147483647, %v710
    %vm721 = vcmp.eq.f32.partialorder %v720, 8.507059e+37
    %v722 = vand.u32 %v710, 2147483648
    %v723 = vor.u32 1.1754944e-38, %v722
    %v724 = vsel %vm721, %v723, %v719
    %v725 = vmul.f32 1.0, %v724
    %v727 = vrot.slane %v706, 1
    %v729 = vxor.u32 %v727, 2147483648
    %v730 = vmul.f32 %v729, 1.442695
    %v731 = vpow.pop %v730
    %v732 = vadd.f32 %v731, 1.0
    %v733 = vrcp.pop %v732
    %v734 = vmul.f32 %v732, %v733
    %v735 = vsub.f32 1.0, %v734
    %v736 = vmul.f32 %v733, %v735
    %v737 = vadd.f32 %v733, %v736
    %vm738 = vweird.f32 %v732
    %vm739 = vweird.f32 %v733
    %vm740 = vmor %vm738, %vm739
    %v741 = vsel %vm740, %v733, %v737
    %v742 = vand.u32 2147483647, %v732
    %vm743 = vcmp.eq.f32.partialorder %v742, 8.507059e+37
    %v744 = vand.u32 %v732, 2147483648
    %v745 = vor.u32 1.1754944e-38, %v744
    %v746 = vsel %vm743, %v745, %v741
    %v747 = vmul.f32 1.0, %v746
    %v748 = vrot.slane %v706, 2
    %v750 = vtanh.pop %v748
    %v751 = vrot.slane %v706, 3
    %v753 = vxor.u32 %v751, 2147483648
    %v754 = vmul.f32 %v753, 1.442695
    %v755 = vpow.pop %v754
    %v756 = vadd.f32 %v755, 1.0
    %v757 = vrcp.pop %v756
    %v758 = vmul.f32 %v756, %v757
    %v759 = vsub.f32 1.0, %v758
    %v760 = vmul.f32 %v757, %v759
    %v761 = vadd.f32 %v757, %v760
    %vm762 = vweird.f32 %v756
    %vm763 = vweird.f32 %v757
    %vm764 = vmor %vm762, %vm763
    %v765 = vsel %vm764, %v757, %v761
    %v766 = vand.u32 2147483647, %v756
    %vm767 = vcmp.eq.f32.partialorder %v766, 8.507059e+37
    %v768 = vand.u32 %v756, 2147483648
    %v769 = vor.u32 1.1754944e-38, %v768
    %v770 = vsel %vm767, %v769, %v765
    %v771 = vmul.f32 1.0, %v770
    %v772 = vmul.f32 %v747, %v548
    %v773 = vmul.f32 %v725, %v750
    %v774 = vadd.f32 %v772, %v773
    %v775 = vtanh.pop %v774
    %v776 = vmul.f32 %v771, %v775
    %777 = vst [vmem:[#allocation10 + $0x2] sm:$0x1] %v776
    %s778 = sadd.s32 %s306, 2
    %p779 = scmp.lt.s32.totalorder %s778, 1
    %s780 = scalar_select %p779, 1, 0
    %v781 = vstv %s780
    %vm782 = vcmp.eq.s32.totalorder %v781, 1
    %v783 = vsel %vm782, %v776, %v547
    %v784 = vsel %vm782, %v774, %v548
    %s785 = scalar_lea.vmem [#allocation4], 3
    %v786 = vld [vmem:[%s785] ss:$8 sm:$0xf]
    %v787 = vld [vmem:[#allocation9] sm:$0xff]
    %v788 = vld [vmem:[#allocation9 + $0x8] sm:$0xff]
    %v789 = vld [vmem:[#allocation9 + $0x10] sm:$0xff]
    %v790 = vld [vmem:[#allocation9 + $0x18] sm:$0xff]
    %v791 = vld [vmem:[#allocation9 + $0x20] sm:$0xff]
    %v792 = vld [vmem:[#allocation9 + $0x28] sm:$0xff]
    %v793 = vld [vmem:[#allocation9 + $0x30] sm:$0xff]
    %v794 = vld [vmem:[#allocation9 + $0x38] sm:$0xff]
    %v795 = vld [vmem:[#allocation9 + $0x40] sm:$0xff]
    %v796 = vld [vmem:[#allocation9 + $0x48] sm:$0xff]
    %v797 = vld [vmem:[#allocation9 + $0x50] sm:$0xff]
    %v798 = vld [vmem:[#allocation9 + $0x58] sm:$0xff]
    %v799 = vld [vmem:[#allocation9 + $0x60] sm:$0xff]
    %v800 = vld [vmem:[#allocation9 + $0x68] sm:$0xff]
    %v801 = vld [vmem:[#allocation9 + $0x70] sm:$0xff]
    %v802 = vld [vmem:[#allocation9 + $0x78] sm:$0xff]
    %v803 = vld [vmem:[#allocation9 + $0x80] sm:$0xff]
    %v804 = vld [vmem:[#allocation9 + $0x88] sm:$0xff]
    %v805 = vld [vmem:[#allocation9 + $0x90] sm:$0xff]
    %v806 = vld [vmem:[#allocation9 + $0x98] sm:$0xff]
    %v807 = vld [vmem:[#allocation9 + $0xa0] sm:$0xff]
    %v808 = vld [vmem:[#allocation9 + $0xa8] sm:$0xff]
    %v809 = vld [vmem:[#allocation9 + $0xb0] sm:$0xff]
    %v810 = vld [vmem:[#allocation9 + $0xb8] sm:$0xff]
    %v811 = vld [vmem:[#allocation9 + $0xc0] sm:$0xff]
    %v812 = vld [vmem:[#allocation9 + $0xc8] sm:$0xff]
    %v813 = vld [vmem:[#allocation9 + $0xd0] sm:$0xff]
    %v814 = vld [vmem:[#allocation9 + $0xd8] sm:$0xff]
    %v815 = vld [vmem:[#allocation9 + $0xe0] sm:$0xff]
    %v816 = vld [vmem:[#allocation9 + $0xe8] sm:$0xff]
    %v817 = vld [vmem:[#allocation9 + $0xf0] sm:$0xff]
    %v818 = vld [vmem:[#allocation9 + $0xf8] sm:$0xff]
    %v819 = vld [vmem:[#allocation9 + $0x100] sm:$0xff]
    %v820 = vld [vmem:[#allocation9 + $0x108] sm:$0xff]
    %v821 = vld [vmem:[#allocation9 + $0x110] sm:$0xff]
    %v822 = vld [vmem:[#allocation9 + $0x118] sm:$0xff]
    %v823 = vld [vmem:[#allocation9 + $0x120] sm:$0xff]
    %v824 = vld [vmem:[#allocation9 + $0x128] sm:$0xff]
    %v825 = vld [vmem:[#allocation9 + $0x130] sm:$0xff]
    %v826 = vld [vmem:[#allocation9 + $0x138] sm:$0xff]
    %v827 = vld [vmem:[#allocation9 + $0x140] sm:$0xff]
    %v828 = vld [vmem:[#allocation9 + $0x148] sm:$0xff]
    %v829 = vld [vmem:[#allocation9 + $0x150] sm:$0xff]
    %v830 = vld [vmem:[#allocation9 + $0x158] sm:$0xff]
    %v831 = vld [vmem:[#allocation9 + $0x160] sm:$0xff]
    %v832 = vld [vmem:[#allocation9 + $0x168] sm:$0xff]
    %v833 = vld [vmem:[#allocation9 + $0x170] sm:$0xff]
    %v834 = vld [vmem:[#allocation9 + $0x178] sm:$0xff]
    %v835 = vld [vmem:[#allocation9 + $0x180] sm:$0xff]
    %v836 = vld [vmem:[#allocation9 + $0x188] sm:$0xff]
    %v837 = vld [vmem:[#allocation9 + $0x190] sm:$0xff]
    %v838 = vld [vmem:[#allocation9 + $0x198] sm:$0xff]
    %v839 = vld [vmem:[#allocation9 + $0x1a0] sm:$0xff]
    %v840 = vld [vmem:[#allocation9 + $0x1a8] sm:$0xff]
    %v841 = vld [vmem:[#allocation9 + $0x1b0] sm:$0xff]
    %v842 = vld [vmem:[#allocation9 + $0x1b8] sm:$0xff]
    %v843 = vld [vmem:[#allocation9 + $0x1c0] sm:$0xff]
    %v844 = vld [vmem:[#allocation9 + $0x1c8] sm:$0xff]
    %v845 = vld [vmem:[#allocation9 + $0x1d0] sm:$0xff]
    %v846 = vld [vmem:[#allocation9 + $0x1d8] sm:$0xff]
    %v847 = vld [vmem:[#allocation9 + $0x1e0] sm:$0xff]
    %v848 = vld [vmem:[#allocation9 + $0x1e8] sm:$0xff]
    %v849 = vld [vmem:[#allocation9 + $0x1f0] sm:$0xff]
    %v850 = vld [vmem:[#allocation9 + $0x1f8] sm:$0xff]
    %851 = vmatpush.msra.mxu0 %v847
    %852 = vmatpush.msra.mxu0 %v843
    %853 = vmatpush.msra.mxu0 %v839
    %854 = vmatpush.msra.mxu0 %v835
    %855 = vmatpush.msra.mxu0 %v831
    %856 = vmatpush.msra.mxu0 %v827
    %857 = vmatpush.msra.mxu0 %v823
    %858 = vmatpush.msra.mxu0 %v819
    %859 = vmatpush.msra.mxu0 %v815
    %860 = vmatpush.msra.mxu0 %v811
    %861 = vmatpush.msra.mxu0 %v807
    %862 = vmatpush.msra.mxu0 %v803
    %863 = vmatpush.msra.mxu0 %v799
    %864 = vmatpush.msra.mxu0 %v795
    %865 = vmatpush.msra.mxu0 %v791
    %866 = vmatpush.msra.mxu0 %v787
    %867 = vmatmul.f32.gmra.mxu0 %v783
    %v868 = vpop.f32.mrf.mxu0
    %v869 = vadd.f32 0.0, %v868
    %870 = vdwg.mxu0
    %871 = vmatpush.msra.mxu0 %v848
    %872 = vmatpush.msra.mxu0 %v844
    %873 = vmatpush.msra.mxu0 %v840
    %874 = vmatpush.msra.mxu0 %v836
    %875 = vmatpush.msra.mxu0 %v832
    %876 = vmatpush.msra.mxu0 %v828
    %877 = vmatpush.msra.mxu0 %v824
    %878 = vmatpush.msra.mxu0 %v820
    %879 = vmatpush.msra.mxu0 %v816
    %880 = vmatpush.msra.mxu0 %v812
    %881 = vmatpush.msra.mxu0 %v808
    %882 = vmatpush.msra.mxu0 %v804
    %883 = vmatpush.msra.mxu0 %v800
    %884 = vmatpush.msra.mxu0 %v796
    %885 = vmatpush.msra.mxu0 %v792
    %886 = vmatpush.msra.mxu0 %v788
    %887 = vmatmul.f32.gmra.mxu0 %v783
    %v888 = vpop.f32.mrf.mxu0
    %v889 = vadd.f32 0.0, %v888
    %890 = vdwg.mxu0
    %891 = vmatpush.msra.mxu0 %v849
    %892 = vmatpush.msra.mxu0 %v845
    %893 = vmatpush.msra.mxu0 %v841
    %894 = vmatpush.msra.mxu0 %v837
    %895 = vmatpush.msra.mxu0 %v833
    %896 = vmatpush.msra.mxu0 %v829
    %897 = vmatpush.msra.mxu0 %v825
    %898 = vmatpush.msra.mxu0 %v821
    %899 = vmatpush.msra.mxu0 %v817
    %900 = vmatpush.msra.mxu0 %v813
    %901 = vmatpush.msra.mxu0 %v809
    %902 = vmatpush.msra.mxu0 %v805
    %903 = vmatpush.msra.mxu0 %v801
    %904 = vmatpush.msra.mxu0 %v797
    %905 = vmatpush.msra.mxu0 %v793
    %906 = vmatpush.msra.mxu0 %v789
    %907 = vmatmul.f32.gmra.mxu0 %v783
    %v908 = vpop.f32.mrf.mxu0
    %v909 = vadd.f32 0.0, %v908
    %910 = vdwg.mxu0
    %911 = vmatpush.msra.mxu0 %v850
    %912 = vmatpush.msra.mxu0 %v846
    %913 = vmatpush.msra.mxu0 %v842
    %914 = vmatpush.msra.mxu0 %v838
    %915 = vmatpush.msra.mxu0 %v834
    %916 = vmatpush.msra.mxu0 %v830
    %917 = vmatpush.msra.mxu0 %v826
    %918 = vmatpush.msra.mxu0 %v822
    %919 = vmatpush.msra.mxu0 %v818
    %920 = vmatpush.msra.mxu0 %v814
    %921 = vmatpush.msra.mxu0 %v810
    %922 = vmatpush.msra.mxu0 %v806
    %923 = vmatpush.msra.mxu0 %v802
    %924 = vmatpush.msra.mxu0 %v798
    %925 = vmatpush.msra.mxu0 %v794
    %926 = vmatpush.msra.mxu0 %v790
    %927 = vmatmul.f32.gmra.mxu0 %v783
    %v928 = vpop.f32.mrf.mxu0
    %v929 = vadd.f32 0.0, %v928
    %930 = vdwg.mxu0
    %v935 = vrot.slane %v889, 7
    %v936 = vrot.slane %v909, 6
    %v937 = vrot.slane %v929, 5
    %v938 = vsel %vm227, %v869, %v935
    %v939 = vsel %vm229, %v936, %v937
    %v940 = vsel %vm231, %v938, %v939
    %v942 = vadd.f32 %v786, %v940
    %v943 = vxor.u32 %v942, 2147483648
    %v944 = vmul.f32 %v943, 1.442695
    %v945 = vpow.pop %v944
    %v946 = vadd.f32 %v945, 1.0
    %v947 = vrcp.pop %v946
    %v948 = vmul.f32 %v946, %v947
    %v949 = vsub.f32 1.0, %v948
    %v950 = vmul.f32 %v947, %v949
    %v951 = vadd.f32 %v947, %v950
    %vm952 = vweird.f32 %v946
    %vm953 = vweird.f32 %v947
    %vm954 = vmor %vm952, %vm953
    %v955 = vsel %vm954, %v947, %v951
    %v956 = vand.u32 2147483647, %v946
    %vm957 = vcmp.eq.f32.partialorder %v956, 8.507059e+37
    %v958 = vand.u32 %v946, 2147483648
    %v959 = vor.u32 1.1754944e-38, %v958
    %v960 = vsel %vm957, %v959, %v955
    %v961 = vmul.f32 1.0, %v960
    %v963 = vrot.slane %v942, 1
    %v965 = vxor.u32 %v963, 2147483648
    %v966 = vmul.f32 %v965, 1.442695
    %v967 = vpow.pop %v966
    %v968 = vadd.f32 %v967, 1.0
    %v969 = vrcp.pop %v968
    %v970 = vmul.f32 %v968, %v969
    %v971 = vsub.f32 1.0, %v970
    %v972 = vmul.f32 %v969, %v971
    %v973 = vadd.f32 %v969, %v972
    %vm974 = vweird.f32 %v968
    %vm975 = vweird.f32 %v969
    %vm976 = vmor %vm974, %vm975
    %v977 = vsel %vm976, %v969, %v973
    %v978 = vand.u32 2147483647, %v968
    %vm979 = vcmp.eq.f32.partialorder %v978, 8.507059e+37
    %v980 = vand.u32 %v968, 2147483648
    %v981 = vor.u32 1.1754944e-38, %v980
    %v982 = vsel %vm979, %v981, %v977
    %v983 = vmul.f32 1.0, %v982
    %v984 = vrot.slane %v942, 2
    %v986 = vtanh.pop %v984
    %v987 = vrot.slane %v942, 3
    %v989 = vxor.u32 %v987, 2147483648
    %v990 = vmul.f32 %v989, 1.442695
    %v991 = vpow.pop %v990
    %v992 = vadd.f32 %v991, 1.0
    %v993 = vrcp.pop %v992
    %v994 = vmul.f32 %v992, %v993
    %v995 = vsub.f32 1.0, %v994
    %v996 = vmul.f32 %v993, %v995
    %v997 = vadd.f32 %v993, %v996
    %vm998 = vweird.f32 %v992
    %vm999 = vweird.f32 %v993
    %vm1000 = vmor %vm998, %vm999
    %v1001 = vsel %vm1000, %v993, %v997
    %v1002 = vand.u32 2147483647, %v992
    %vm1003 = vcmp.eq.f32.partialorder %v1002, 8.507059e+37
    %v1004 = vand.u32 %v992, 2147483648
    %v1005 = vor.u32 1.1754944e-38, %v1004
    %v1006 = vsel %vm1003, %v1005, %v1001
    %v1007 = vmul.f32 1.0, %v1006
    %v1008 = vmul.f32 %v983, %v784
    %v1009 = vmul.f32 %v961, %v986
    %v1010 = vadd.f32 %v1008, %v1009
    %v1011 = vtanh.pop %v1010
    %v1012 = vmul.f32 %v1007, %v1011
    %1013 = vst [vmem:[#allocation10 + $0x3] sm:$0x1] %v1012
    %s1014 = sadd.s32 %s306, 3
    %p1015 = scmp.lt.s32.totalorder %s1014, 1
    %s1016 = scalar_select %p1015, 1, 0
    %v1017 = vstv %s1016
    %vm1018 = vcmp.eq.s32.totalorder %v1017, 1
    %v1019 = vsel %vm1018, %v1012, %v783
    %v1020 = vsel %vm1018, %v1010, %v784
    %s1021 = scalar_lea.vmem [#allocation4], 4
    %v1022 = vld [vmem:[%s1021] ss:$8 sm:$0xf]
    %v1023 = vld [vmem:[#allocation9] sm:$0xff]
    %v1024 = vld [vmem:[#allocation9 + $0x8] sm:$0xff]
    %v1025 = vld [vmem:[#allocation9 + $0x10] sm:$0xff]
    %v1026 = vld [vmem:[#allocation9 + $0x18] sm:$0xff]
    %v1027 = vld [vmem:[#allocation9 + $0x20] sm:$0xff]
    %v1028 = vld [vmem:[#allocation9 + $0x28] sm:$0xff]
    %v1029 = vld [vmem:[#allocation9 + $0x30] sm:$0xff]
    %v1030 = vld [vmem:[#allocation9 + $0x38] sm:$0xff]
    %v1031 = vld [vmem:[#allocation9 + $0x40] sm:$0xff]
    %v1032 = vld [vmem:[#allocation9 + $0x48] sm:$0xff]
    %v1033 = vld [vmem:[#allocation9 + $0x50] sm:$0xff]
    %v1034 = vld [vmem:[#allocation9 + $0x58] sm:$0xff]
    %v1035 = vld [vmem:[#allocation9 + $0x60] sm:$0xff]
    %v1036 = vld [vmem:[#allocation9 + $0x68] sm:$0xff]
    %v1037 = vld [vmem:[#allocation9 + $0x70] sm:$0xff]
    %v1038 = vld [vmem:[#allocation9 + $0x78] sm:$0xff]
    %v1039 = vld [vmem:[#allocation9 + $0x80] sm:$0xff]
    %v1040 = vld [vmem:[#allocation9 + $0x88] sm:$0xff]
    %v1041 = vld [vmem:[#allocation9 + $0x90] sm:$0xff]
    %v1042 = vld [vmem:[#allocation9 + $0x98] sm:$0xff]
    %v1043 = vld [vmem:[#allocation9 + $0xa0] sm:$0xff]
    %v1044 = vld [vmem:[#allocation9 + $0xa8] sm:$0xff]
    %v1045 = vld [vmem:[#allocation9 + $0xb0] sm:$0xff]
    %v1046 = vld [vmem:[#allocation9 + $0xb8] sm:$0xff]
    %v1047 = vld [vmem:[#allocation9 + $0xc0] sm:$0xff]
    %v1048 = vld [vmem:[#allocation9 + $0xc8] sm:$0xff]
    %v1049 = vld [vmem:[#allocation9 + $0xd0] sm:$0xff]
    %v1050 = vld [vmem:[#allocation9 + $0xd8] sm:$0xff]
    %v1051 = vld [vmem:[#allocation9 + $0xe0] sm:$0xff]
    %v1052 = vld [vmem:[#allocation9 + $0xe8] sm:$0xff]
    %v1053 = vld [vmem:[#allocation9 + $0xf0] sm:$0xff]
    %v1054 = vld [vmem:[#allocation9 + $0xf8] sm:$0xff]
    %v1055 = vld [vmem:[#allocation9 + $0x100] sm:$0xff]
    %v1056 = vld [vmem:[#allocation9 + $0x108] sm:$0xff]
    %v1057 = vld [vmem:[#allocation9 + $0x110] sm:$0xff]
    %v1058 = vld [vmem:[#allocation9 + $0x118] sm:$0xff]
    %v1059 = vld [vmem:[#allocation9 + $0x120] sm:$0xff]
    %v1060 = vld [vmem:[#allocation9 + $0x128] sm:$0xff]
    %v1061 = vld [vmem:[#allocation9 + $0x130] sm:$0xff]
    %v1062 = vld [vmem:[#allocation9 + $0x138] sm:$0xff]
    %v1063 = vld [vmem:[#allocation9 + $0x140] sm:$0xff]
    %v1064 = vld [vmem:[#allocation9 + $0x148] sm:$0xff]
    %v1065 = vld [vmem:[#allocation9 + $0x150] sm:$0xff]
    %v1066 = vld [vmem:[#allocation9 + $0x158] sm:$0xff]
    %v1067 = vld [vmem:[#allocation9 + $0x160] sm:$0xff]
    %v1068 = vld [vmem:[#allocation9 + $0x168] sm:$0xff]
    %v1069 = vld [vmem:[#allocation9 + $0x170] sm:$0xff]
    %v1070 = vld [vmem:[#allocation9 + $0x178] sm:$0xff]
    %v1071 = vld [vmem:[#allocation9 + $0x180] sm:$0xff]
    %v1072 = vld [vmem:[#allocation9 + $0x188] sm:$0xff]
    %v1073 = vld [vmem:[#allocation9 + $0x190] sm:$0xff]
    %v1074 = vld [vmem:[#allocation9 + $0x198] sm:$0xff]
    %v1075 = vld [vmem:[#allocation9 + $0x1a0] sm:$0xff]
    %v1076 = vld [vmem:[#allocation9 + $0x1a8] sm:$0xff]
    %v1077 = vld [vmem:[#allocation9 + $0x1b0] sm:$0xff]
    %v1078 = vld [vmem:[#allocation9 + $0x1b8] sm:$0xff]
    %v1079 = vld [vmem:[#allocation9 + $0x1c0] sm:$0xff]
    %v1080 = vld [vmem:[#allocation9 + $0x1c8] sm:$0xff]
    %v1081 = vld [vmem:[#allocation9 + $0x1d0] sm:$0xff]
    %v1082 = vld [vmem:[#allocation9 + $0x1d8] sm:$0xff]
    %v1083 = vld [vmem:[#allocation9 + $0x1e0] sm:$0xff]
    %v1084 = vld [vmem:[#allocation9 + $0x1e8] sm:$0xff]
    %v1085 = vld [vmem:[#allocation9 + $0x1f0] sm:$0xff]
    %v1086 = vld [vmem:[#allocation9 + $0x1f8] sm:$0xff]
    %1087 = vmatpush.msra.mxu0 %v1083
    %1088 = vmatpush.msra.mxu0 %v1079
    %1089 = vmatpush.msra.mxu0 %v1075
    %1090 = vmatpush.msra.mxu0 %v1071
    %1091 = vmatpush.msra.mxu0 %v1067
    %1092 = vmatpush.msra.mxu0 %v1063
    %1093 = vmatpush.msra.mxu0 %v1059
    %1094 = vmatpush.msra.mxu0 %v1055
    %1095 = vmatpush.msra.mxu0 %v1051
    %1096 = vmatpush.msra.mxu0 %v1047
    %1097 = vmatpush.msra.mxu0 %v1043
    %1098 = vmatpush.msra.mxu0 %v1039
    %1099 = vmatpush.msra.mxu0 %v1035
    %1100 = vmatpush.msra.mxu0 %v1031
    %1101 = vmatpush.msra.mxu0 %v1027
    %1102 = vmatpush.msra.mxu0 %v1023
    %1103 = vmatmul.f32.gmra.mxu0 %v1019
    %v1104 = vpop.f32.mrf.mxu0
    %v1105 = vadd.f32 0.0, %v1104
    %1106 = vdwg.mxu0
    %1107 = vmatpush.msra.mxu0 %v1084
    %1108 = vmatpush.msra.mxu0 %v1080
    %1109 = vmatpush.msra.mxu0 %v1076
    %1110 = vmatpush.msra.mxu0 %v1072
    %1111 = vmatpush.msra.mxu0 %v1068
    %1112 = vmatpush.msra.mxu0 %v1064
    %1113 = vmatpush.msra.mxu0 %v1060
    %1114 = vmatpush.msra.mxu0 %v1056
    %1115 = vmatpush.msra.mxu0 %v1052
    %1116 = vmatpush.msra.mxu0 %v1048
    %1117 = vmatpush.msra.mxu0 %v1044
    %1118 = vmatpush.msra.mxu0 %v1040
    %1119 = vmatpush.msra.mxu0 %v1036
    %1120 = vmatpush.msra.mxu0 %v1032
    %1121 = vmatpush.msra.mxu0 %v1028
    %1122 = vmatpush.msra.mxu0 %v1024
    %1123 = vmatmul.f32.gmra.mxu0 %v1019
    %v1124 = vpop.f32.mrf.mxu0
    %v1125 = vadd.f32 0.0, %v1124
    %1126 = vdwg.mxu0
    %1127 = vmatpush.msra.mxu0 %v1085
    %1128 = vmatpush.msra.mxu0 %v1081
    %1129 = vmatpush.msra.mxu0 %v1077
    %1130 = vmatpush.msra.mxu0 %v1073
    %1131 = vmatpush.msra.mxu0 %v1069
    %1132 = vmatpush.msra.mxu0 %v1065
    %1133 = vmatpush.msra.mxu0 %v1061
    %1134 = vmatpush.msra.mxu0 %v1057
    %1135 = vmatpush.msra.mxu0 %v1053
    %1136 = vmatpush.msra.mxu0 %v1049
    %1137 = vmatpush.msra.mxu0 %v1045
    %1138 = vmatpush.msra.mxu0 %v1041
    %1139 = vmatpush.msra.mxu0 %v1037
    %1140 = vmatpush.msra.mxu0 %v1033
    %1141 = vmatpush.msra.mxu0 %v1029
    %1142 = vmatpush.msra.mxu0 %v1025
    %1143 = vmatmul.f32.gmra.mxu0 %v1019
    %v1144 = vpop.f32.mrf.mxu0
    %v1145 = vadd.f32 0.0, %v1144
    %1146 = vdwg.mxu0
    %1147 = vmatpush.msra.mxu0 %v1086
    %1148 = vmatpush.msra.mxu0 %v1082
    %1149 = vmatpush.msra.mxu0 %v1078
    %1150 = vmatpush.msra.mxu0 %v1074
    %1151 = vmatpush.msra.mxu0 %v1070
    %1152 = vmatpush.msra.mxu0 %v1066
    %1153 = vmatpush.msra.mxu0 %v1062
    %1154 = vmatpush.msra.mxu0 %v1058
    %1155 = vmatpush.msra.mxu0 %v1054
    %1156 = vmatpush.msra.mxu0 %v1050
    %1157 = vmatpush.msra.mxu0 %v1046
    %1158 = vmatpush.msra.mxu0 %v1042
    %1159 = vmatpush.msra.mxu0 %v1038
    %1160 = vmatpush.msra.mxu0 %v1034
    %1161 = vmatpush.msra.mxu0 %v1030
    %1162 = vmatpush.msra.mxu0 %v1026
    %1163 = vmatmul.f32.gmra.mxu0 %v1019
    %v1164 = vpop.f32.mrf.mxu0
    %v1165 = vadd.f32 0.0, %v1164
    %1166 = vdwg.mxu0
    %v1171 = vrot.slane %v1125, 7
    %v1172 = vrot.slane %v1145, 6
    %v1173 = vrot.slane %v1165, 5
    %v1174 = vsel %vm227, %v1105, %v1171
    %v1175 = vsel %vm229, %v1172, %v1173
    %v1176 = vsel %vm231, %v1174, %v1175
    %v1178 = vadd.f32 %v1022, %v1176
    %v1179 = vxor.u32 %v1178, 2147483648
    %v1180 = vmul.f32 %v1179, 1.442695
    %v1181 = vpow.pop %v1180
    %v1182 = vadd.f32 %v1181, 1.0
    %v1183 = vrcp.pop %v1182
    %v1184 = vmul.f32 %v1182, %v1183
    %v1185 = vsub.f32 1.0, %v1184
    %v1186 = vmul.f32 %v1183, %v1185
    %v1187 = vadd.f32 %v1183, %v1186
    %vm1188 = vweird.f32 %v1182
    %vm1189 = vweird.f32 %v1183
    %vm1190 = vmor %vm1188, %vm1189
    %v1191 = vsel %vm1190, %v1183, %v1187
    %v1192 = vand.u32 2147483647, %v1182
    %vm1193 = vcmp.eq.f32.partialorder %v1192, 8.507059e+37
    %v1194 = vand.u32 %v1182, 2147483648
    %v1195 = vor.u32 1.1754944e-38, %v1194
    %v1196 = vsel %vm1193, %v1195, %v1191
    %v1197 = vmul.f32 1.0, %v1196
    %v1199 = vrot.slane %v1178, 1
    %v1201 = vxor.u32 %v1199, 2147483648
    %v1202 = vmul.f32 %v1201, 1.442695
    %v1203 = vpow.pop %v1202
    %v1204 = vadd.f32 %v1203, 1.0
    %v1205 = vrcp.pop %v1204
    %v1206 = vmul.f32 %v1204, %v1205
    %v1207 = vsub.f32 1.0, %v1206
    %v1208 = vmul.f32 %v1205, %v1207
    %v1209 = vadd.f32 %v1205, %v1208
    %vm1210 = vweird.f32 %v1204
    %vm1211 = vweird.f32 %v1205
    %vm1212 = vmor %vm1210, %vm1211
    %v1213 = vsel %vm1212, %v1205, %v1209
    %v1214 = vand.u32 2147483647, %v1204
    %vm1215 = vcmp.eq.f32.partialorder %v1214, 8.507059e+37
    %v1216 = vand.u32 %v1204, 2147483648
    %v1217 = vor.u32 1.1754944e-38, %v1216
    %v1218 = vsel %vm1215, %v1217, %v1213
    %v1219 = vmul.f32 1.0, %v1218
    %v1220 = vrot.slane %v1178, 2
    %v1222 = vtanh.pop %v1220
    %v1223 = vrot.slane %v1178, 3
    %v1225 = vxor.u32 %v1223, 2147483648
    %v1226 = vmul.f32 %v1225, 1.442695
    %v1227 = vpow.pop %v1226
    %v1228 = vadd.f32 %v1227, 1.0
    %v1229 = vrcp.pop %v1228
    %v1230 = vmul.f32 %v1228, %v1229
    %v1231 = vsub.f32 1.0, %v1230
    %v1232 = vmul.f32 %v1229, %v1231
    %v1233 = vadd.f32 %v1229, %v1232
    %vm1234 = vweird.f32 %v1228
    %vm1235 = vweird.f32 %v1229
    %vm1236 = vmor %vm1234, %vm1235
    %v1237 = vsel %vm1236, %v1229, %v1233
    %v1238 = vand.u32 2147483647, %v1228
    %vm1239 = vcmp.eq.f32.partialorder %v1238, 8.507059e+37
    %v1240 = vand.u32 %v1228, 2147483648
    %v1241 = vor.u32 1.1754944e-38, %v1240
    %v1242 = vsel %vm1239, %v1241, %v1237
    %v1243 = vmul.f32 1.0, %v1242
    %v1244 = vmul.f32 %v1219, %v1020
    %v1245 = vmul.f32 %v1197, %v1222
    %v1246 = vadd.f32 %v1244, %v1245
    %v1247 = vtanh.pop %v1246
    %v1248 = vmul.f32 %v1243, %v1247
    %1249 = vst [vmem:[#allocation10 + $0x4] sm:$0x1] %v1248
    %s1250 = sadd.s32 %s306, 4
    %p1251 = scmp.lt.s32.totalorder %s1250, 1
    %s1252 = scalar_select %p1251, 1, 0
    %v1253 = vstv %s1252
    %vm1254 = vcmp.eq.s32.totalorder %v1253, 1
    %v1255 = vsel %vm1254, %v1248, %v1019
    %v1256 = vsel %vm1254, %v1246, %v1020
    %s1257 = scalar_lea.vmem [#allocation4], 5
    %v1258 = vld [vmem:[%s1257] ss:$8 sm:$0xf]
    %v1259 = vld [vmem:[#allocation9] sm:$0xff]
    %v1260 = vld [vmem:[#allocation9 + $0x8] sm:$0xff]
    %v1261 = vld [vmem:[#allocation9 + $0x10] sm:$0xff]
    %v1262 = vld [vmem:[#allocation9 + $0x18] sm:$0xff]
    %v1263 = vld [vmem:[#allocation9 + $0x20] sm:$0xff]
    %v1264 = vld [vmem:[#allocation9 + $0x28] sm:$0xff]
    %v1265 = vld [vmem:[#allocation9 + $0x30] sm:$0xff]
    %v1266 = vld [vmem:[#allocation9 + $0x38] sm:$0xff]
    %v1267 = vld [vmem:[#allocation9 + $0x40] sm:$0xff]
    %v1268 = vld [vmem:[#allocation9 + $0x48] sm:$0xff]
    %v1269 = vld [vmem:[#allocation9 + $0x50] sm:$0xff]
    %v1270 = vld [vmem:[#allocation9 + $0x58] sm:$0xff]
    %v1271 = vld [vmem:[#allocation9 + $0x60] sm:$0xff]
    %v1272 = vld [vmem:[#allocation9 + $0x68] sm:$0xff]
    %v1273 = vld [vmem:[#allocation9 + $0x70] sm:$0xff]
    %v1274 = vld [vmem:[#allocation9 + $0x78] sm:$0xff]
    %v1275 = vld [vmem:[#allocation9 + $0x80] sm:$0xff]
    %v1276 = vld [vmem:[#allocation9 + $0x88] sm:$0xff]
    %v1277 = vld [vmem:[#allocation9 + $0x90] sm:$0xff]
    %v1278 = vld [vmem:[#allocation9 + $0x98] sm:$0xff]
    %v1279 = vld [vmem:[#allocation9 + $0xa0] sm:$0xff]
    %v1280 = vld [vmem:[#allocation9 + $0xa8] sm:$0xff]
    %v1281 = vld [vmem:[#allocation9 + $0xb0] sm:$0xff]
    %v1282 = vld [vmem:[#allocation9 + $0xb8] sm:$0xff]
    %v1283 = vld [vmem:[#allocation9 + $0xc0] sm:$0xff]
    %v1284 = vld [vmem:[#allocation9 + $0xc8] sm:$0xff]
    %v1285 = vld [vmem:[#allocation9 + $0xd0] sm:$0xff]
    %v1286 = vld [vmem:[#allocation9 + $0xd8] sm:$0xff]
    %v1287 = vld [vmem:[#allocation9 + $0xe0] sm:$0xff]
    %v1288 = vld [vmem:[#allocation9 + $0xe8] sm:$0xff]
    %v1289 = vld [vmem:[#allocation9 + $0xf0] sm:$0xff]
    %v1290 = vld [vmem:[#allocation9 + $0xf8] sm:$0xff]
    %v1291 = vld [vmem:[#allocation9 + $0x100] sm:$0xff]
    %v1292 = vld [vmem:[#allocation9 + $0x108] sm:$0xff]
    %v1293 = vld [vmem:[#allocation9 + $0x110] sm:$0xff]
    %v1294 = vld [vmem:[#allocation9 + $0x118] sm:$0xff]
    %v1295 = vld [vmem:[#allocation9 + $0x120] sm:$0xff]
    %v1296 = vld [vmem:[#allocation9 + $0x128] sm:$0xff]
    %v1297 = vld [vmem:[#allocation9 + $0x130] sm:$0xff]
    %v1298 = vld [vmem:[#allocation9 + $0x138] sm:$0xff]
    %v1299 = vld [vmem:[#allocation9 + $0x140] sm:$0xff]
    %v1300 = vld [vmem:[#allocation9 + $0x148] sm:$0xff]
    %v1301 = vld [vmem:[#allocation9 + $0x150] sm:$0xff]
    %v1302 = vld [vmem:[#allocation9 + $0x158] sm:$0xff]
    %v1303 = vld [vmem:[#allocation9 + $0x160] sm:$0xff]
    %v1304 = vld [vmem:[#allocation9 + $0x168] sm:$0xff]
    %v1305 = vld [vmem:[#allocation9 + $0x170] sm:$0xff]
    %v1306 = vld [vmem:[#allocation9 + $0x178] sm:$0xff]
    %v1307 = vld [vmem:[#allocation9 + $0x180] sm:$0xff]
    %v1308 = vld [vmem:[#allocation9 + $0x188] sm:$0xff]
    %v1309 = vld [vmem:[#allocation9 + $0x190] sm:$0xff]
    %v1310 = vld [vmem:[#allocation9 + $0x198] sm:$0xff]
    %v1311 = vld [vmem:[#allocation9 + $0x1a0] sm:$0xff]
    %v1312 = vld [vmem:[#allocation9 + $0x1a8] sm:$0xff]
    %v1313 = vld [vmem:[#allocation9 + $0x1b0] sm:$0xff]
    %v1314 = vld [vmem:[#allocation9 + $0x1b8] sm:$0xff]
    %v1315 = vld [vmem:[#allocation9 + $0x1c0] sm:$0xff]
    %v1316 = vld [vmem:[#allocation9 + $0x1c8] sm:$0xff]
    %v1317 = vld [vmem:[#allocation9 + $0x1d0] sm:$0xff]
    %v1318 = vld [vmem:[#allocation9 + $0x1d8] sm:$0xff]
    %v1319 = vld [vmem:[#allocation9 + $0x1e0] sm:$0xff]
    %v1320 = vld [vmem:[#allocation9 + $0x1e8] sm:$0xff]
    %v1321 = vld [vmem:[#allocation9 + $0x1f0] sm:$0xff]
    %v1322 = vld [vmem:[#allocation9 + $0x1f8] sm:$0xff]
    %1323 = vmatpush.msra.mxu0 %v1319
    %1324 = vmatpush.msra.mxu0 %v1315
    %1325 = vmatpush.msra.mxu0 %v1311
    %1326 = vmatpush.msra.mxu0 %v1307
    %1327 = vmatpush.msra.mxu0 %v1303
    %1328 = vmatpush.msra.mxu0 %v1299
    %1329 = vmatpush.msra.mxu0 %v1295
    %1330 = vmatpush.msra.mxu0 %v1291
    %1331 = vmatpush.msra.mxu0 %v1287
    %1332 = vmatpush.msra.mxu0 %v1283
    %1333 = vmatpush.msra.mxu0 %v1279
    %1334 = vmatpush.msra.mxu0 %v1275
    %1335 = vmatpush.msra.mxu0 %v1271
    %1336 = vmatpush.msra.mxu0 %v1267
    %1337 = vmatpush.msra.mxu0 %v1263
    %1338 = vmatpush.msra.mxu0 %v1259
    %1339 = vmatmul.f32.gmra.mxu0 %v1255
    %v1340 = vpop.f32.mrf.mxu0
    %v1341 = vadd.f32 0.0, %v1340
    %1342 = vdwg.mxu0
    %1343 = vmatpush.msra.mxu0 %v1320
    %1344 = vmatpush.msra.mxu0 %v1316
    %1345 = vmatpush.msra.mxu0 %v1312
    %1346 = vmatpush.msra.mxu0 %v1308
    %1347 = vmatpush.msra.mxu0 %v1304
    %1348 = vmatpush.msra.mxu0 %v1300
    %1349 = vmatpush.msra.mxu0 %v1296
    %1350 = vmatpush.msra.mxu0 %v1292
    %1351 = vmatpush.msra.mxu0 %v1288
    %1352 = vmatpush.msra.mxu0 %v1284
    %1353 = vmatpush.msra.mxu0 %v1280
    %1354 = vmatpush.msra.mxu0 %v1276
    %1355 = vmatpush.msra.mxu0 %v1272
    %1356 = vmatpush.msra.mxu0 %v1268
    %1357 = vmatpush.msra.mxu0 %v1264
    %1358 = vmatpush.msra.mxu0 %v1260
    %1359 = vmatmul.f32.gmra.mxu0 %v1255
    %v1360 = vpop.f32.mrf.mxu0
    %v1361 = vadd.f32 0.0, %v1360
    %1362 = vdwg.mxu0
    %1363 = vmatpush.msra.mxu0 %v1321
    %1364 = vmatpush.msra.mxu0 %v1317
    %1365 = vmatpush.msra.mxu0 %v1313
    %1366 = vmatpush.msra.mxu0 %v1309
    %1367 = vmatpush.msra.mxu0 %v1305
    %1368 = vmatpush.msra.mxu0 %v1301
    %1369 = vmatpush.msra.mxu0 %v1297
    %1370 = vmatpush.msra.mxu0 %v1293
    %1371 = vmatpush.msra.mxu0 %v1289
    %1372 = vmatpush.msra.mxu0 %v1285
    %1373 = vmatpush.msra.mxu0 %v1281
    %1374 = vmatpush.msra.mxu0 %v1277
    %1375 = vmatpush.msra.mxu0 %v1273
    %1376 = vmatpush.msra.mxu0 %v1269
    %1377 = vmatpush.msra.mxu0 %v1265
    %1378 = vmatpush.msra.mxu0 %v1261
    %1379 = vmatmul.f32.gmra.mxu0 %v1255
    %v1380 = vpop.f32.mrf.mxu0
    %v1381 = vadd.f32 0.0, %v1380
    %1382 = vdwg.mxu0
    %1383 = vmatpush.msra.mxu0 %v1322
    %1384 = vmatpush.msra.mxu0 %v1318
    %1385 = vmatpush.msra.mxu0 %v1314
    %1386 = vmatpush.msra.mxu0 %v1310
    %1387 = vmatpush.msra.mxu0 %v1306
    %1388 = vmatpush.msra.mxu0 %v1302
    %1389 = vmatpush.msra.mxu0 %v1298
    %1390 = vmatpush.msra.mxu0 %v1294
    %1391 = vmatpush.msra.mxu0 %v1290
    %1392 = vmatpush.msra.mxu0 %v1286
    %1393 = vmatpush.msra.mxu0 %v1282
    %1394 = vmatpush.msra.mxu0 %v1278
    %1395 = vmatpush.msra.mxu0 %v1274
    %1396 = vmatpush.msra.mxu0 %v1270
    %1397 = vmatpush.msra.mxu0 %v1266
    %1398 = vmatpush.msra.mxu0 %v1262
    %1399 = vmatmul.f32.gmra.mxu0 %v1255
    %v1400 = vpop.f32.mrf.mxu0
    %v1401 = vadd.f32 0.0, %v1400
    %1402 = vdwg.mxu0
    %v1407 = vrot.slane %v1361, 7
    %v1408 = vrot.slane %v1381, 6
    %v1409 = vrot.slane %v1401, 5
    %v1410 = vsel %vm227, %v1341, %v1407
    %v1411 = vsel %vm229, %v1408, %v1409
    %v1412 = vsel %vm231, %v1410, %v1411
    %v1414 = vadd.f32 %v1258, %v1412
    %v1415 = vxor.u32 %v1414, 2147483648
    %v1416 = vmul.f32 %v1415, 1.442695
    %v1417 = vpow.pop %v1416
    %v1418 = vadd.f32 %v1417, 1.0
    %v1419 = vrcp.pop %v1418
    %v1420 = vmul.f32 %v1418, %v1419
    %v1421 = vsub.f32 1.0, %v1420
    %v1422 = vmul.f32 %v1419, %v1421
    %v1423 = vadd.f32 %v1419, %v1422
    %vm1424 = vweird.f32 %v1418
    %vm1425 = vweird.f32 %v1419
    %vm1426 = vmor %vm1424, %vm1425
    %v1427 = vsel %vm1426, %v1419, %v1423
    %v1428 = vand.u32 2147483647, %v1418
    %vm1429 = vcmp.eq.f32.partialorder %v1428, 8.507059e+37
    %v1430 = vand.u32 %v1418, 2147483648
    %v1431 = vor.u32 1.1754944e-38, %v1430
    %v1432 = vsel %vm1429, %v1431, %v1427
    %v1433 = vmul.f32 1.0, %v1432
    %v1435 = vrot.slane %v1414, 1
    %v1437 = vxor.u32 %v1435, 2147483648
    %v1438 = vmul.f32 %v1437, 1.442695
    %v1439 = vpow.pop %v1438
    %v1440 = vadd.f32 %v1439, 1.0
    %v1441 = vrcp.pop %v1440
    %v1442 = vmul.f32 %v1440, %v1441
    %v1443 = vsub.f32 1.0, %v1442
    %v1444 = vmul.f32 %v1441, %v1443
    %v1445 = vadd.f32 %v1441, %v1444
    %vm1446 = vweird.f32 %v1440
    %vm1447 = vweird.f32 %v1441
    %vm1448 = vmor %vm1446, %vm1447
    %v1449 = vsel %vm1448, %v1441, %v1445
    %v1450 = vand.u32 2147483647, %v1440
    %vm1451 = vcmp.eq.f32.partialorder %v1450, 8.507059e+37
    %v1452 = vand.u32 %v1440, 2147483648
    %v1453 = vor.u32 1.1754944e-38, %v1452
    %v1454 = vsel %vm1451, %v1453, %v1449
    %v1455 = vmul.f32 1.0, %v1454
    %v1456 = vrot.slane %v1414, 2
    %v1458 = vtanh.pop %v1456
    %v1459 = vrot.slane %v1414, 3
    %v1461 = vxor.u32 %v1459, 2147483648
    %v1462 = vmul.f32 %v1461, 1.442695
    %v1463 = vpow.pop %v1462
    %v1464 = vadd.f32 %v1463, 1.0
    %v1465 = vrcp.pop %v1464
    %v1466 = vmul.f32 %v1464, %v1465
    %v1467 = vsub.f32 1.0, %v1466
    %v1468 = vmul.f32 %v1465, %v1467
    %v1469 = vadd.f32 %v1465, %v1468
    %vm1470 = vweird.f32 %v1464
    %vm1471 = vweird.f32 %v1465
    %vm1472 = vmor %vm1470, %vm1471
    %v1473 = vsel %vm1472, %v1465, %v1469
    %v1474 = vand.u32 2147483647, %v1464
    %vm1475 = vcmp.eq.f32.partialorder %v1474, 8.507059e+37
    %v1476 = vand.u32 %v1464, 2147483648
    %v1477 = vor.u32 1.1754944e-38, %v1476
    %v1478 = vsel %vm1475, %v1477, %v1473
    %v1479 = vmul.f32 1.0, %v1478
    %v1480 = vmul.f32 %v1455, %v1256
    %v1481 = vmul.f32 %v1433, %v1458
    %v1482 = vadd.f32 %v1480, %v1481
    %v1483 = vtanh.pop %v1482
    %v1484 = vmul.f32 %v1479, %v1483
    %1485 = vst [vmem:[#allocation10 + $0x5] sm:$0x1] %v1484
    %s1486 = sadd.s32 %s306, 5
    %p1487 = scmp.lt.s32.totalorder %s1486, 1
    %s1488 = scalar_select %p1487, 1, 0
    %v1489 = vstv %s1488
    %vm1490 = vcmp.eq.s32.totalorder %v1489, 1
    %v1491 = vsel %vm1490, %v1484, %v1255
    %v1492 = vsel %vm1490, %v1482, %v1256
    %s1493 = scalar_lea.vmem [#allocation4], 6
    %v1494 = vld [vmem:[%s1493] ss:$8 sm:$0xf]
    %v1495 = vld [vmem:[#allocation9] sm:$0xff]
    %v1496 = vld [vmem:[#allocation9 + $0x8] sm:$0xff]
    %v1497 = vld [vmem:[#allocation9 + $0x10] sm:$0xff]
    %v1498 = vld [vmem:[#allocation9 + $0x18] sm:$0xff]
    %v1499 = vld [vmem:[#allocation9 + $0x20] sm:$0xff]
    %v1500 = vld [vmem:[#allocation9 + $0x28] sm:$0xff]
    %v1501 = vld [vmem:[#allocation9 + $0x30] sm:$0xff]
    %v1502 = vld [vmem:[#allocation9 + $0x38] sm:$0xff]
    %v1503 = vld [vmem:[#allocation9 + $0x40] sm:$0xff]
    %v1504 = vld [vmem:[#allocation9 + $0x48] sm:$0xff]
    %v1505 = vld [vmem:[#allocation9 + $0x50] sm:$0xff]
    %v1506 = vld [vmem:[#allocation9 + $0x58] sm:$0xff]
    %v1507 = vld [vmem:[#allocation9 + $0x60] sm:$0xff]
    %v1508 = vld [vmem:[#allocation9 + $0x68] sm:$0xff]
    %v1509 = vld [vmem:[#allocation9 + $0x70] sm:$0xff]
    %v1510 = vld [vmem:[#allocation9 + $0x78] sm:$0xff]
    %v1511 = vld [vmem:[#allocation9 + $0x80] sm:$0xff]
    %v1512 = vld [vmem:[#allocation9 + $0x88] sm:$0xff]
    %v1513 = vld [vmem:[#allocation9 + $0x90] sm:$0xff]
    %v1514 = vld [vmem:[#allocation9 + $0x98] sm:$0xff]
    %v1515 = vld [vmem:[#allocation9 + $0xa0] sm:$0xff]
    %v1516 = vld [vmem:[#allocation9 + $0xa8] sm:$0xff]
    %v1517 = vld [vmem:[#allocation9 + $0xb0] sm:$0xff]
    %v1518 = vld [vmem:[#allocation9 + $0xb8] sm:$0xff]
    %v1519 = vld [vmem:[#allocation9 + $0xc0] sm:$0xff]
    %v1520 = vld [vmem:[#allocation9 + $0xc8] sm:$0xff]
    %v1521 = vld [vmem:[#allocation9 + $0xd0] sm:$0xff]
    %v1522 = vld [vmem:[#allocation9 + $0xd8] sm:$0xff]
    %v1523 = vld [vmem:[#allocation9 + $0xe0] sm:$0xff]
    %v1524 = vld [vmem:[#allocation9 + $0xe8] sm:$0xff]
    %v1525 = vld [vmem:[#allocation9 + $0xf0] sm:$0xff]
    %v1526 = vld [vmem:[#allocation9 + $0xf8] sm:$0xff]
    %v1527 = vld [vmem:[#allocation9 + $0x100] sm:$0xff]
    %v1528 = vld [vmem:[#allocation9 + $0x108] sm:$0xff]
    %v1529 = vld [vmem:[#allocation9 + $0x110] sm:$0xff]
    %v1530 = vld [vmem:[#allocation9 + $0x118] sm:$0xff]
    %v1531 = vld [vmem:[#allocation9 + $0x120] sm:$0xff]
    %v1532 = vld [vmem:[#allocation9 + $0x128] sm:$0xff]
    %v1533 = vld [vmem:[#allocation9 + $0x130] sm:$0xff]
    %v1534 = vld [vmem:[#allocation9 + $0x138] sm:$0xff]
    %v1535 = vld [vmem:[#allocation9 + $0x140] sm:$0xff]
    %v1536 = vld [vmem:[#allocation9 + $0x148] sm:$0xff]
    %v1537 = vld [vmem:[#allocation9 + $0x150] sm:$0xff]
    %v1538 = vld [vmem:[#allocation9 + $0x158] sm:$0xff]
    %v1539 = vld [vmem:[#allocation9 + $0x160] sm:$0xff]
    %v1540 = vld [vmem:[#allocation9 + $0x168] sm:$0xff]
    %v1541 = vld [vmem:[#allocation9 + $0x170] sm:$0xff]
    %v1542 = vld [vmem:[#allocation9 + $0x178] sm:$0xff]
    %v1543 = vld [vmem:[#allocation9 + $0x180] sm:$0xff]
    %v1544 = vld [vmem:[#allocation9 + $0x188] sm:$0xff]
    %v1545 = vld [vmem:[#allocation9 + $0x190] sm:$0xff]
    %v1546 = vld [vmem:[#allocation9 + $0x198] sm:$0xff]
    %v1547 = vld [vmem:[#allocation9 + $0x1a0] sm:$0xff]
    %v1548 = vld [vmem:[#allocation9 + $0x1a8] sm:$0xff]
    %v1549 = vld [vmem:[#allocation9 + $0x1b0] sm:$0xff]
    %v1550 = vld [vmem:[#allocation9 + $0x1b8] sm:$0xff]
    %v1551 = vld [vmem:[#allocation9 + $0x1c0] sm:$0xff]
    %v1552 = vld [vmem:[#allocation9 + $0x1c8] sm:$0xff]
    %v1553 = vld [vmem:[#allocation9 + $0x1d0] sm:$0xff]
    %v1554 = vld [vmem:[#allocation9 + $0x1d8] sm:$0xff]
    %v1555 = vld [vmem:[#allocation9 + $0x1e0] sm:$0xff]
    %v1556 = vld [vmem:[#allocation9 + $0x1e8] sm:$0xff]
    %v1557 = vld [vmem:[#allocation9 + $0x1f0] sm:$0xff]
    %v1558 = vld [vmem:[#allocation9 + $0x1f8] sm:$0xff]
    %1559 = vmatpush.msra.mxu0 %v1555
    %1560 = vmatpush.msra.mxu0 %v1551
    %1561 = vmatpush.msra.mxu0 %v1547
    %1562 = vmatpush.msra.mxu0 %v1543
    %1563 = vmatpush.msra.mxu0 %v1539
    %1564 = vmatpush.msra.mxu0 %v1535
    %1565 = vmatpush.msra.mxu0 %v1531
    %1566 = vmatpush.msra.mxu0 %v1527
    %1567 = vmatpush.msra.mxu0 %v1523
    %1568 = vmatpush.msra.mxu0 %v1519
    %1569 = vmatpush.msra.mxu0 %v1515
    %1570 = vmatpush.msra.mxu0 %v1511
    %1571 = vmatpush.msra.mxu0 %v1507
    %1572 = vmatpush.msra.mxu0 %v1503
    %1573 = vmatpush.msra.mxu0 %v1499
    %1574 = vmatpush.msra.mxu0 %v1495
    %1575 = vmatmul.f32.gmra.mxu0 %v1491
    %v1576 = vpop.f32.mrf.mxu0
    %v1577 = vadd.f32 0.0, %v1576
    %1578 = vdwg.mxu0
    %1579 = vmatpush.msra.mxu0 %v1556
    %1580 = vmatpush.msra.mxu0 %v1552
    %1581 = vmatpush.msra.mxu0 %v1548
    %1582 = vmatpush.msra.mxu0 %v1544
    %1583 = vmatpush.msra.mxu0 %v1540
    %1584 = vmatpush.msra.mxu0 %v1536
    %1585 = vmatpush.msra.mxu0 %v1532
    %1586 = vmatpush.msra.mxu0 %v1528
    %1587 = vmatpush.msra.mxu0 %v1524
    %1588 = vmatpush.msra.mxu0 %v1520
    %1589 = vmatpush.msra.mxu0 %v1516
    %1590 = vmatpush.msra.mxu0 %v1512
    %1591 = vmatpush.msra.mxu0 %v1508
    %1592 = vmatpush.msra.mxu0 %v1504
    %1593 = vmatpush.msra.mxu0 %v1500
    %1594 = vmatpush.msra.mxu0 %v1496
    %1595 = vmatmul.f32.gmra.mxu0 %v1491
    %v1596 = vpop.f32.mrf.mxu0
    %v1597 = vadd.f32 0.0, %v1596
    %1598 = vdwg.mxu0
    %1599 = vmatpush.msra.mxu0 %v1557
    %1600 = vmatpush.msra.mxu0 %v1553
    %1601 = vmatpush.msra.mxu0 %v1549
    %1602 = vmatpush.msra.mxu0 %v1545
    %1603 = vmatpush.msra.mxu0 %v1541
    %1604 = vmatpush.msra.mxu0 %v1537
    %1605 = vmatpush.msra.mxu0 %v1533
    %1606 = vmatpush.msra.mxu0 %v1529
    %1607 = vmatpush.msra.mxu0 %v1525
    %1608 = vmatpush.msra.mxu0 %v1521
    %1609 = vmatpush.msra.mxu0 %v1517
    %1610 = vmatpush.msra.mxu0 %v1513
    %1611 = vmatpush.msra.mxu0 %v1509
    %1612 = vmatpush.msra.mxu0 %v1505
    %1613 = vmatpush.msra.mxu0 %v1501
    %1614 = vmatpush.msra.mxu0 %v1497
    %1615 = vmatmul.f32.gmra.mxu0 %v1491
    %v1616 = vpop.f32.mrf.mxu0
    %v1617 = vadd.f32 0.0, %v1616
    %1618 = vdwg.mxu0
    %1619 = vmatpush.msra.mxu0 %v1558
    %1620 = vmatpush.msra.mxu0 %v1554
    %1621 = vmatpush.msra.mxu0 %v1550
    %1622 = vmatpush.msra.mxu0 %v1546
    %1623 = vmatpush.msra.mxu0 %v1542
    %1624 = vmatpush.msra.mxu0 %v1538
    %1625 = vmatpush.msra.mxu0 %v1534
    %1626 = vmatpush.msra.mxu0 %v1530
    %1627 = vmatpush.msra.mxu0 %v1526
    %1628 = vmatpush.msra.mxu0 %v1522
    %1629 = vmatpush.msra.mxu0 %v1518
    %1630 = vmatpush.msra.mxu0 %v1514
    %1631 = vmatpush.msra.mxu0 %v1510
    %1632 = vmatpush.msra.mxu0 %v1506
    %1633 = vmatpush.msra.mxu0 %v1502
    %1634 = vmatpush.msra.mxu0 %v1498
    %1635 = vmatmul.f32.gmra.mxu0 %v1491
    %v1636 = vpop.f32.mrf.mxu0
    %v1637 = vadd.f32 0.0, %v1636
    %1638 = vdwg.mxu0
    %v1643 = vrot.slane %v1597, 7
    %v1644 = vrot.slane %v1617, 6
    %v1645 = vrot.slane %v1637, 5
    %v1646 = vsel %vm227, %v1577, %v1643
    %v1647 = vsel %vm229, %v1644, %v1645
    %v1648 = vsel %vm231, %v1646, %v1647
    %v1650 = vadd.f32 %v1494, %v1648
    %v1651 = vxor.u32 %v1650, 2147483648
    %v1652 = vmul.f32 %v1651, 1.442695
    %v1653 = vpow.pop %v1652
    %v1654 = vadd.f32 %v1653, 1.0
    %v1655 = vrcp.pop %v1654
    %v1656 = vmul.f32 %v1654, %v1655
    %v1657 = vsub.f32 1.0, %v1656
    %v1658 = vmul.f32 %v1655, %v1657
    %v1659 = vadd.f32 %v1655, %v1658
    %vm1660 = vweird.f32 %v1654
    %vm1661 = vweird.f32 %v1655
    %vm1662 = vmor %vm1660, %vm1661
    %v1663 = vsel %vm1662, %v1655, %v1659
    %v1664 = vand.u32 2147483647, %v1654
    %vm1665 = vcmp.eq.f32.partialorder %v1664, 8.507059e+37
    %v1666 = vand.u32 %v1654, 2147483648
    %v1667 = vor.u32 1.1754944e-38, %v1666
    %v1668 = vsel %vm1665, %v1667, %v1663
    %v1669 = vmul.f32 1.0, %v1668
    %v1671 = vrot.slane %v1650, 1
    %v1673 = vxor.u32 %v1671, 2147483648
    %v1674 = vmul.f32 %v1673, 1.442695
    %v1675 = vpow.pop %v1674
    %v1676 = vadd.f32 %v1675, 1.0
    %v1677 = vrcp.pop %v1676
    %v1678 = vmul.f32 %v1676, %v1677
    %v1679 = vsub.f32 1.0, %v1678
    %v1680 = vmul.f32 %v1677, %v1679
    %v1681 = vadd.f32 %v1677, %v1680
    %vm1682 = vweird.f32 %v1676
    %vm1683 = vweird.f32 %v1677
    %vm1684 = vmor %vm1682, %vm1683
    %v1685 = vsel %vm1684, %v1677, %v1681
    %v1686 = vand.u32 2147483647, %v1676
    %vm1687 = vcmp.eq.f32.partialorder %v1686, 8.507059e+37
    %v1688 = vand.u32 %v1676, 2147483648
    %v1689 = vor.u32 1.1754944e-38, %v1688
    %v1690 = vsel %vm1687, %v1689, %v1685
    %v1691 = vmul.f32 1.0, %v1690
    %v1692 = vrot.slane %v1650, 2
    %v1694 = vtanh.pop %v1692
    %v1695 = vrot.slane %v1650, 3
    %v1697 = vxor.u32 %v1695, 2147483648
    %v1698 = vmul.f32 %v1697, 1.442695
    %v1699 = vpow.pop %v1698
    %v1700 = vadd.f32 %v1699, 1.0
    %v1701 = vrcp.pop %v1700
    %v1702 = vmul.f32 %v1700, %v1701
    %v1703 = vsub.f32 1.0, %v1702
    %v1704 = vmul.f32 %v1701, %v1703
    %v1705 = vadd.f32 %v1701, %v1704
    %vm1706 = vweird.f32 %v1700
    %vm1707 = vweird.f32 %v1701
    %vm1708 = vmor %vm1706, %vm1707
    %v1709 = vsel %vm1708, %v1701, %v1705
    %v1710 = vand.u32 2147483647, %v1700
    %vm1711 = vcmp.eq.f32.partialorder %v1710, 8.507059e+37
    %v1712 = vand.u32 %v1700, 2147483648
    %v1713 = vor.u32 1.1754944e-38, %v1712
    %v1714 = vsel %vm1711, %v1713, %v1709
    %v1715 = vmul.f32 1.0, %v1714
    %v1716 = vmul.f32 %v1691, %v1492
    %v1717 = vmul.f32 %v1669, %v1694
    %v1718 = vadd.f32 %v1716, %v1717
    %v1719 = vtanh.pop %v1718
    %v1720 = vmul.f32 %v1715, %v1719
    %1721 = vst [vmem:[#allocation10 + $0x6] sm:$0x1] %v1720
    %s1722 = sadd.s32 %s306, 6
    %p1723 = scmp.lt.s32.totalorder %s1722, 1
    %s1724 = scalar_select %p1723, 1, 0
    %v1725 = vstv %s1724
    %vm1726 = vcmp.eq.s32.totalorder %v1725, 1
    %v1727 = vsel %vm1726, %v1720, %v1491
    %v1728 = vsel %vm1726, %v1718, %v1492
    %s1729 = scalar_lea.vmem [#allocation4], 7
    %v1730 = vld [vmem:[%s1729] ss:$8 sm:$0xf]
    %v1731 = vld [vmem:[#allocation9] sm:$0xff]
    %v1732 = vld [vmem:[#allocation9 + $0x8] sm:$0xff]
    %v1733 = vld [vmem:[#allocation9 + $0x10] sm:$0xff]
    %v1734 = vld [vmem:[#allocation9 + $0x18] sm:$0xff]
    %v1735 = vld [vmem:[#allocation9 + $0x20] sm:$0xff]
    %v1736 = vld [vmem:[#allocation9 + $0x28] sm:$0xff]
    %v1737 = vld [vmem:[#allocation9 + $0x30] sm:$0xff]
    %v1738 = vld [vmem:[#allocation9 + $0x38] sm:$0xff]
    %v1739 = vld [vmem:[#allocation9 + $0x40] sm:$0xff]
    %v1740 = vld [vmem:[#allocation9 + $0x48] sm:$0xff]
    %v1741 = vld [vmem:[#allocation9 + $0x50] sm:$0xff]
    %v1742 = vld [vmem:[#allocation9 + $0x58] sm:$0xff]
    %v1743 = vld [vmem:[#allocation9 + $0x60] sm:$0xff]
    %v1744 = vld [vmem:[#allocation9 + $0x68] sm:$0xff]
    %v1745 = vld [vmem:[#allocation9 + $0x70] sm:$0xff]
    %v1746 = vld [vmem:[#allocation9 + $0x78] sm:$0xff]
    %v1747 = vld [vmem:[#allocation9 + $0x80] sm:$0xff]
    %v1748 = vld [vmem:[#allocation9 + $0x88] sm:$0xff]
    %v1749 = vld [vmem:[#allocation9 + $0x90] sm:$0xff]
    %v1750 = vld [vmem:[#allocation9 + $0x98] sm:$0xff]
    %v1751 = vld [vmem:[#allocation9 + $0xa0] sm:$0xff]
    %v1752 = vld [vmem:[#allocation9 + $0xa8] sm:$0xff]
    %v1753 = vld [vmem:[#allocation9 + $0xb0] sm:$0xff]
    %v1754 = vld [vmem:[#allocation9 + $0xb8] sm:$0xff]
    %v1755 = vld [vmem:[#allocation9 + $0xc0] sm:$0xff]
    %v1756 = vld [vmem:[#allocation9 + $0xc8] sm:$0xff]
    %v1757 = vld [vmem:[#allocation9 + $0xd0] sm:$0xff]
    %v1758 = vld [vmem:[#allocation9 + $0xd8] sm:$0xff]
    %v1759 = vld [vmem:[#allocation9 + $0xe0] sm:$0xff]
    %v1760 = vld [vmem:[#allocation9 + $0xe8] sm:$0xff]
    %v1761 = vld [vmem:[#allocation9 + $0xf0] sm:$0xff]
    %v1762 = vld [vmem:[#allocation9 + $0xf8] sm:$0xff]
    %v1763 = vld [vmem:[#allocation9 + $0x100] sm:$0xff]
    %v1764 = vld [vmem:[#allocation9 + $0x108] sm:$0xff]
    %v1765 = vld [vmem:[#allocation9 + $0x110] sm:$0xff]
    %v1766 = vld [vmem:[#allocation9 + $0x118] sm:$0xff]
    %v1767 = vld [vmem:[#allocation9 + $0x120] sm:$0xff]
    %v1768 = vld [vmem:[#allocation9 + $0x128] sm:$0xff]
    %v1769 = vld [vmem:[#allocation9 + $0x130] sm:$0xff]
    %v1770 = vld [vmem:[#allocation9 + $0x138] sm:$0xff]
    %v1771 = vld [vmem:[#allocation9 + $0x140] sm:$0xff]
    %v1772 = vld [vmem:[#allocation9 + $0x148] sm:$0xff]
    %v1773 = vld [vmem:[#allocation9 + $0x150] sm:$0xff]
    %v1774 = vld [vmem:[#allocation9 + $0x158] sm:$0xff]
    %v1775 = vld [vmem:[#allocation9 + $0x160] sm:$0xff]
    %v1776 = vld [vmem:[#allocation9 + $0x168] sm:$0xff]
    %v1777 = vld [vmem:[#allocation9 + $0x170] sm:$0xff]
    %v1778 = vld [vmem:[#allocation9 + $0x178] sm:$0xff]
    %v1779 = vld [vmem:[#allocation9 + $0x180] sm:$0xff]
    %v1780 = vld [vmem:[#allocation9 + $0x188] sm:$0xff]
    %v1781 = vld [vmem:[#allocation9 + $0x190] sm:$0xff]
    %v1782 = vld [vmem:[#allocation9 + $0x198] sm:$0xff]
    %v1783 = vld [vmem:[#allocation9 + $0x1a0] sm:$0xff]
    %v1784 = vld [vmem:[#allocation9 + $0x1a8] sm:$0xff]
    %v1785 = vld [vmem:[#allocation9 + $0x1b0] sm:$0xff]
    %v1786 = vld [vmem:[#allocation9 + $0x1b8] sm:$0xff]
    %v1787 = vld [vmem:[#allocation9 + $0x1c0] sm:$0xff]
    %v1788 = vld [vmem:[#allocation9 + $0x1c8] sm:$0xff]
    %v1789 = vld [vmem:[#allocation9 + $0x1d0] sm:$0xff]
    %v1790 = vld [vmem:[#allocation9 + $0x1d8] sm:$0xff]
    %v1791 = vld [vmem:[#allocation9 + $0x1e0] sm:$0xff]
    %v1792 = vld [vmem:[#allocation9 + $0x1e8] sm:$0xff]
    %v1793 = vld [vmem:[#allocation9 + $0x1f0] sm:$0xff]
    %v1794 = vld [vmem:[#allocation9 + $0x1f8] sm:$0xff]
    %1795 = vmatpush.msra.mxu0 %v1791
    %1796 = vmatpush.msra.mxu0 %v1787
    %1797 = vmatpush.msra.mxu0 %v1783
    %1798 = vmatpush.msra.mxu0 %v1779
    %1799 = vmatpush.msra.mxu0 %v1775
    %1800 = vmatpush.msra.mxu0 %v1771
    %1801 = vmatpush.msra.mxu0 %v1767
    %1802 = vmatpush.msra.mxu0 %v1763
    %1803 = vmatpush.msra.mxu0 %v1759
    %1804 = vmatpush.msra.mxu0 %v1755
    %1805 = vmatpush.msra.mxu0 %v1751
    %1806 = vmatpush.msra.mxu0 %v1747
    %1807 = vmatpush.msra.mxu0 %v1743
    %1808 = vmatpush.msra.mxu0 %v1739
    %1809 = vmatpush.msra.mxu0 %v1735
    %1810 = vmatpush.msra.mxu0 %v1731
    %1811 = vmatmul.f32.gmra.mxu0 %v1727
    %v1812 = vpop.f32.mrf.mxu0
    %v1813 = vadd.f32 0.0, %v1812
    %1814 = vdwg.mxu0
    %1815 = vmatpush.msra.mxu0 %v1792
    %1816 = vmatpush.msra.mxu0 %v1788
    %1817 = vmatpush.msra.mxu0 %v1784
    %1818 = vmatpush.msra.mxu0 %v1780
    %1819 = vmatpush.msra.mxu0 %v1776
    %1820 = vmatpush.msra.mxu0 %v1772
    %1821 = vmatpush.msra.mxu0 %v1768
    %1822 = vmatpush.msra.mxu0 %v1764
    %1823 = vmatpush.msra.mxu0 %v1760
    %1824 = vmatpush.msra.mxu0 %v1756
    %1825 = vmatpush.msra.mxu0 %v1752
    %1826 = vmatpush.msra.mxu0 %v1748
    %1827 = vmatpush.msra.mxu0 %v1744
    %1828 = vmatpush.msra.mxu0 %v1740
    %1829 = vmatpush.msra.mxu0 %v1736
    %1830 = vmatpush.msra.mxu0 %v1732
    %1831 = vmatmul.f32.gmra.mxu0 %v1727
    %v1832 = vpop.f32.mrf.mxu0
    %v1833 = vadd.f32 0.0, %v1832
    %1834 = vdwg.mxu0
    %1835 = vmatpush.msra.mxu0 %v1793
    %1836 = vmatpush.msra.mxu0 %v1789
    %1837 = vmatpush.msra.mxu0 %v1785
    %1838 = vmatpush.msra.mxu0 %v1781
    %1839 = vmatpush.msra.mxu0 %v1777
    %1840 = vmatpush.msra.mxu0 %v1773
    %1841 = vmatpush.msra.mxu0 %v1769
    %1842 = vmatpush.msra.mxu0 %v1765
    %1843 = vmatpush.msra.mxu0 %v1761
    %1844 = vmatpush.msra.mxu0 %v1757
    %1845 = vmatpush.msra.mxu0 %v1753
    %1846 = vmatpush.msra.mxu0 %v1749
    %1847 = vmatpush.msra.mxu0 %v1745
    %1848 = vmatpush.msra.mxu0 %v1741
    %1849 = vmatpush.msra.mxu0 %v1737
    %1850 = vmatpush.msra.mxu0 %v1733
    %1851 = vmatmul.f32.gmra.mxu0 %v1727
    %v1852 = vpop.f32.mrf.mxu0
    %v1853 = vadd.f32 0.0, %v1852
    %1854 = vdwg.mxu0
    %1855 = vmatpush.msra.mxu0 %v1794
    %1856 = vmatpush.msra.mxu0 %v1790
    %1857 = vmatpush.msra.mxu0 %v1786
    %1858 = vmatpush.msra.mxu0 %v1782
    %1859 = vmatpush.msra.mxu0 %v1778
    %1860 = vmatpush.msra.mxu0 %v1774
    %1861 = vmatpush.msra.mxu0 %v1770
    %1862 = vmatpush.msra.mxu0 %v1766
    %1863 = vmatpush.msra.mxu0 %v1762
    %1864 = vmatpush.msra.mxu0 %v1758
    %1865 = vmatpush.msra.mxu0 %v1754
    %1866 = vmatpush.msra.mxu0 %v1750
    %1867 = vmatpush.msra.mxu0 %v1746
    %1868 = vmatpush.msra.mxu0 %v1742
    %1869 = vmatpush.msra.mxu0 %v1738
    %1870 = vmatpush.msra.mxu0 %v1734
    %1871 = vmatmul.f32.gmra.mxu0 %v1727
    %v1872 = vpop.f32.mrf.mxu0
    %v1873 = vadd.f32 0.0, %v1872
    %1874 = vdwg.mxu0
    %v1879 = vrot.slane %v1833, 7
    %v1880 = vrot.slane %v1853, 6
    %v1881 = vrot.slane %v1873, 5
    %v1882 = vsel %vm227, %v1813, %v1879
    %v1883 = vsel %vm229, %v1880, %v1881
    %v1884 = vsel %vm231, %v1882, %v1883
    %v1886 = vadd.f32 %v1730, %v1884
    %v1887 = vxor.u32 %v1886, 2147483648
    %v1888 = vmul.f32 %v1887, 1.442695
    %v1889 = vpow.pop %v1888
    %v1890 = vadd.f32 %v1889, 1.0
    %v1891 = vrcp.pop %v1890
    %v1892 = vmul.f32 %v1890, %v1891
    %v1893 = vsub.f32 1.0, %v1892
    %v1894 = vmul.f32 %v1891, %v1893
    %v1895 = vadd.f32 %v1891, %v1894
    %vm1896 = vweird.f32 %v1890
    %vm1897 = vweird.f32 %v1891
    %vm1898 = vmor %vm1896, %vm1897
    %v1899 = vsel %vm1898, %v1891, %v1895
    %v1900 = vand.u32 2147483647, %v1890
    %vm1901 = vcmp.eq.f32.partialorder %v1900, 8.507059e+37
    %v1902 = vand.u32 %v1890, 2147483648
    %v1903 = vor.u32 1.1754944e-38, %v1902
    %v1904 = vsel %vm1901, %v1903, %v1899
    %v1905 = vmul.f32 1.0, %v1904
    %v1907 = vrot.slane %v1886, 1
    %v1909 = vxor.u32 %v1907, 2147483648
    %v1910 = vmul.f32 %v1909, 1.442695
    %v1911 = vpow.pop %v1910
    %v1912 = vadd.f32 %v1911, 1.0
    %v1913 = vrcp.pop %v1912
    %v1914 = vmul.f32 %v1912, %v1913
    %v1915 = vsub.f32 1.0, %v1914
    %v1916 = vmul.f32 %v1913, %v1915
    %v1917 = vadd.f32 %v1913, %v1916
    %vm1918 = vweird.f32 %v1912
    %vm1919 = vweird.f32 %v1913
    %vm1920 = vmor %vm1918, %vm1919
    %v1921 = vsel %vm1920, %v1913, %v1917
    %v1922 = vand.u32 2147483647, %v1912
    %vm1923 = vcmp.eq.f32.partialorder %v1922, 8.507059e+37
    %v1924 = vand.u32 %v1912, 2147483648
    %v1925 = vor.u32 1.1754944e-38, %v1924
    %v1926 = vsel %vm1923, %v1925, %v1921
    %v1927 = vmul.f32 1.0, %v1926
    %v1928 = vrot.slane %v1886, 2
    %v1930 = vtanh.pop %v1928
    %v1931 = vrot.slane %v1886, 3
    %v1933 = vxor.u32 %v1931, 2147483648
    %v1934 = vmul.f32 %v1933, 1.442695
    %v1935 = vpow.pop %v1934
    %v1936 = vadd.f32 %v1935, 1.0
    %v1937 = vrcp.pop %v1936
    %v1938 = vmul.f32 %v1936, %v1937
    %v1939 = vsub.f32 1.0, %v1938
    %v1940 = vmul.f32 %v1937, %v1939
    %v1941 = vadd.f32 %v1937, %v1940
    %vm1942 = vweird.f32 %v1936
    %vm1943 = vweird.f32 %v1937
    %vm1944 = vmor %vm1942, %vm1943
    %v1945 = vsel %vm1944, %v1937, %v1941
    %v1946 = vand.u32 2147483647, %v1936
    %vm1947 = vcmp.eq.f32.partialorder %v1946, 8.507059e+37
    %v1948 = vand.u32 %v1936, 2147483648
    %v1949 = vor.u32 1.1754944e-38, %v1948
    %v1950 = vsel %vm1947, %v1949, %v1945
    %v1951 = vmul.f32 1.0, %v1950
    %v1952 = vmul.f32 %v1927, %v1728
    %v1953 = vmul.f32 %v1905, %v1930
    %v1954 = vadd.f32 %v1952, %v1953
    %v1955 = vtanh.pop %v1954
    %v1956 = vmul.f32 %v1951, %v1955
    %1957 = vst [vmem:[#allocation10 + $0x7] sm:$0x1] %v1956
    %s1958 = sadd.s32 %s306, 7
    %p1959 = scmp.lt.s32.totalorder %s1958, 1
    %s1960 = scalar_select %p1959, 1, 0
    %v1961 = vstv %s1960
    %vm1962 = vcmp.eq.s32.totalorder %v1961, 1
    %v1963 = vsel %vm1962, %v1956, %v1727
    %v1964 = vsel %vm1962, %v1954, %v1728
    %1965 = vst [vmem:[#allocation2] sm:$0x1] %v1963
    %1966 = vst [vmem:[#allocation3] sm:$0x1] %v1964
    %1967 = vst [vmem:[#allocation11] sm:$0x1] %v1963
    %1968 = vst [vmem:[#allocation13] sm:$0x1] %v1964
    // Predicated region
    $region34: #{tpu_custom_call.1} parent=1 // pred_check
      _
    $region35: #{tpu_custom_call.1} parent=1 // pred_check_branch
      %1970 = sbr.rel (0) target = $region37
    $region36: #{tpu_custom_call.1} parent=1 // pred_region
      %1972 = vsyncadd [#allocation6], 0
      %s1974 = sshll.u32 [#allocation10], 4
      %s1975 = int_to_ptr.vmem [resolvable:$true] %s1974
      %s1976 = sshll.u32 %s4, 4
      %s1977 = int_to_ptr.hbm [resolvable:$true] %s1976
      %1979 = dma.vmem_to_hbm [thread:$0]  %s1975, 128, %s1977, [#allocation6]
    $region37: #{tpu_custom_call.1} parent=1 // pred_fallthru
      _
    // Predicated region
    $region38: #{tpu_custom_call.1} parent=1 // pred_check
      _
    $region39: #{tpu_custom_call.1} parent=1 // pred_check_branch
      %1981 = sbr.rel (0) target = $region41
    $region40: #{tpu_custom_call.1} parent=1 // pred_region
      %1983 = vsyncadd [#allocation12], 0
      %s1985 = sshll.u32 [#allocation11], 4
      %s1986 = int_to_ptr.vmem [resolvable:$true] %s1985
      %s1987 = sshll.u32 %s5, 4
      %s1988 = int_to_ptr.hbm [resolvable:$true] %s1987
      %1990 = dma.vmem_to_hbm [thread:$0]  %s1986, 16, %s1988, [#allocation12]
    $region41: #{tpu_custom_call.1} parent=1 // pred_fallthru
      _
    // Predicated region
    $region42: #{tpu_custom_call.1} parent=1 // pred_check
      _
    $region43: #{tpu_custom_call.1} parent=1 // pred_check_branch
      %1992 = sbr.rel (0) target = $region45
    $region44: #{tpu_custom_call.1} parent=1 // pred_region
      %1994 = vsyncadd [#allocation12], 0
      %s1996 = sshll.u32 [#allocation13], 4
      %s1997 = int_to_ptr.vmem [resolvable:$true] %s1996
      %s1998 = sshll.u32 %s6, 4
      %s1999 = int_to_ptr.hbm [resolvable:$true] %s1998
      %2001 = dma.vmem_to_hbm [thread:$0]  %s1997, 16, %s1999, [#allocation12]
    $region45: #{tpu_custom_call.1} parent=1 // pred_fallthru
      _
    // Predicated region
    $region46: #{tpu_custom_call.1} parent=1 // pred_check
      _
    $region47: #{tpu_custom_call.1} parent=1 // pred_check_branch
      %2003 = sbr.rel (0) target = $region49
    $region48: #{tpu_custom_call.1} parent=1 // pred_region
      %2005 = dma.done [#allocation6], 128
    $region49: #{tpu_custom_call.1} parent=1 // pred_fallthru
      _
    // Predicated region
    $region50: #{tpu_custom_call.1} parent=1 // pred_check
      _
    $region51: #{tpu_custom_call.1} parent=1 // pred_check_branch
      %2007 = sbr.rel (0) target = $region53
    $region52: #{tpu_custom_call.1} parent=1 // pred_region
      %2009 = dma.done [#allocation12], 16
    $region53: #{tpu_custom_call.1} parent=1 // pred_fallthru
      _
    // Predicated region
    $region54: #{tpu_custom_call.1} parent=1 // pred_check
      _
    $region55: #{tpu_custom_call.1} parent=1 // pred_check_branch
      %2011 = sbr.rel (0) target = $region57
    $region56: #{tpu_custom_call.1} parent=1 // pred_region
      %2013 = dma.done [#allocation12], 16
    $region57: #{tpu_custom_call.1} parent=1 // pred_fallthru
      _
    %2014 = vsyncpa [#allocation5], 1
    %2015 = vsyncpa [#allocation8], 1
    %2016 = vsyncpa [#allocation6], 1
    %2017 = vsyncpa [#allocation12], 1

</llo_original>
